<compile_context>
chip_gen: v6e
topology: v6e:2x2x1
jax: 0.10.0
libtpu: 0.0.40
codegen_flags: <defaults>
</compile_context>

<pallas_src>
import math

import jax
import jax.numpy as jnp
from jax.experimental import pallas as pl
from jax.experimental.pallas import tpu as pltpu


H_PAD = 128     # lane-dense padding of the hidden dim (32 -> 128)
DEC_PAD = 128   # lane-dense padding of the decoder hidden dim (2 -> 128)
OUT_PAD = 128   # lane-dense padding of the 2-wide decoder output


def _round_up(x, m):
    return (x + m - 1) // m * m


def _u_kernel(src_ref, dstc_ref, dstr_ref,            # VMEM int32 [E,1],[E,1],[1,E]
              xf_ref, node_f_ref,                     # VMEM f32 [N,2],[N,Dm]
              ne_w1a_ref, ne_w1b_ref, ne_b1_ref, ne_w2_ref, ne_b2_ref,
              ee_w1a_ref, ee_w1b_ref, ee_b1_ref, ee_w2_ref, ee_b2_ref,
              nd_w1a_ref, nd_w1b_ref, nd_b1_ref, nd_w2_ref, nd_b2_ref,
              out_ref):                               # VMEM f32 [N, OUT_PAD]
    f32 = jnp.float32
    n_nodes = xf_ref.shape[0]
    n_edges = src_ref.shape[0]

    def mlp2(x_a, x_b, w1a, w1b, b1, w2, b2):
        # tanh(cat([x_a, x_b], 1) @ [w1a; w1b] + b1) @ w2 + b2, with the concat
        # folded into two matmuls (weights pre-split + zero-padded on the host).
        h = jnp.dot(x_a, w1a, preferred_element_type=f32)
        h = h + jnp.dot(x_b, w1b, preferred_element_type=f32)
        h = jnp.tanh(h + b1)
        return jnp.dot(h, w2, preferred_element_type=f32) + b2

    # ---- node encoder: cat(xf, node_f) -> node_emb [N, H_PAD] ----
    node_emb = mlp2(xf_ref[...], node_f_ref[...],
                    ne_w1a_ref[...], ne_w1b_ref[...], ne_b1_ref[...],
                    ne_w2_ref[...], ne_b2_ref[...])

    # ---- gather edge endpoints via in-kernel one-hot matmuls (MXU) ----
    node_ids = jax.lax.broadcasted_iota(jnp.int32, (n_edges, n_nodes), 1)
    onehot_src = (node_ids == src_ref[...]).astype(f32)    # [E, N]
    onehot_dst = (node_ids == dstc_ref[...]).astype(f32)   # [E, N]
    src_emb = jnp.dot(onehot_src, node_emb, preferred_element_type=f32)
    dst_emb = jnp.dot(onehot_dst, node_emb, preferred_element_type=f32)

    # ---- edge encoder: cat(src_emb, dst_emb) -> edge_emb [E, H_PAD] ----
    edge_emb = mlp2(src_emb, dst_emb,
                    ee_w1a_ref[...], ee_w1b_ref[...], ee_b1_ref[...],
                    ee_w2_ref[...], ee_b2_ref[...])

    # ---- scatter-add edge_emb into destination nodes via one-hot matmul ----
    node_pos = jax.lax.broadcasted_iota(jnp.int32, (n_nodes, n_edges), 0)
    onehot_scatter = (node_pos == dstr_ref[...]).astype(f32)  # [N, E]
    node_agg = jnp.dot(onehot_scatter, edge_emb, preferred_element_type=f32)

    # ---- node decoder: cat(node_emb, node_agg) -> [N, OUT_PAD] (cols>=2 are 0) ----
    out_ref[...] = mlp2(node_emb, node_agg,
                        nd_w1a_ref[...], nd_w1b_ref[...], nd_b1_ref[...],
                        nd_w2_ref[...], nd_b2_ref[...]).astype(out_ref.dtype)


def _linear_params(key, in_dim, out_dim):
    """PyTorch nn.Linear default init: U(-1/sqrt(in), 1/sqrt(in))."""
    kw, kb = jax.random.split(key)
    bound = 1.0 / math.sqrt(in_dim)
    w = jax.random.uniform(kw, (in_dim, out_dim), jnp.float32, -bound, bound)
    b = jax.random.uniform(kb, (1, out_dim), jnp.float32, -bound, bound)
    return w, b


def init_params(key, model_dim, hid_dim):
    """PyTorch-layout parameters (used by the pure-JAX reference)."""
    ks = jax.random.split(key, 6)
    ne_w1, ne_b1 = _linear_params(ks[0], 2 + model_dim, hid_dim)
    ne_w2, ne_b2 = _linear_params(ks[1], hid_dim, hid_dim)
    ee_w1, ee_b1 = _linear_params(ks[2], 2 * hid_dim, hid_dim)
    ee_w2, ee_b2 = _linear_params(ks[3], hid_dim, hid_dim)
    nd_w1, nd_b1 = _linear_params(ks[4], 2 * hid_dim, 2)
    nd_w2, nd_b2 = _linear_params(ks[5], 2, 2)
    return (ne_w1, ne_b1, ne_w2, ne_b2,
            ee_w1, ee_b1, ee_w2, ee_b2,
            nd_w1, nd_b1, nd_w2, nd_b2)


def pack_params(params, h_pad=H_PAD, dec_pad=DEC_PAD, out_pad=OUT_PAD):
    """One-time host-side repack: split the concatenated first-layer weights and
    zero-pad every hidden/output dim to 128 lanes so the kernel never slices
    weights and every matmul / elementwise op / store is lane-dense.  All padding
    is exact (zero rows/cols, zero biases, tanh(0)=0)."""
    (ne_w1, ne_b1, ne_w2, ne_b2,
     ee_w1, ee_b1, ee_w2, ee_b2,
     nd_w1, nd_b1, nd_w2, nd_b2) = params
    hid = ne_w2.shape[0]

    def pad2(x, rows, cols):
        return jnp.pad(x, ((0, rows - x.shape[0]), (0, cols - x.shape[1])))

    # node encoder: input = [xf (2) | node_f (Dm)]
    ne_w1a = pad2(ne_w1[:2], 2, h_pad)
    ne_w1b = pad2(ne_w1[2:], ne_w1.shape[0] - 2, h_pad)
    ne_b1p = pad2(ne_b1, 1, h_pad)
    ne_w2p = pad2(ne_w2, h_pad, h_pad)
    ne_b2p = pad2(ne_b2, 1, h_pad)
    # edge encoder: input = [src_emb (H) | dst_emb (H)]
    ee_w1a = pad2(ee_w1[:hid], h_pad, h_pad)
    ee_w1b = pad2(ee_w1[hid:], h_pad, h_pad)
    ee_b1p = pad2(ee_b1, 1, h_pad)
    ee_w2p = pad2(ee_w2, h_pad, h_pad)
    ee_b2p = pad2(ee_b2, 1, h_pad)
    # node decoder: input = [node_emb (H) | node_agg (H)], hidden 2 -> dec_pad,
    # output 2 -> out_pad (lane-dense final store; wrapper slices [:, :2]).
    nd_w1a = pad2(nd_w1[:hid], h_pad, dec_pad)
    nd_w1b = pad2(nd_w1[hid:], h_pad, dec_pad)
    nd_b1p = pad2(nd_b1, 1, dec_pad)
    nd_w2p = pad2(nd_w2, dec_pad, out_pad)
    nd_b2p = pad2(nd_b2, 1, out_pad)
    return (ne_w1a, ne_w1b, ne_b1p, ne_w2p, ne_b2p,
            ee_w1a, ee_w1b, ee_b1p, ee_w2p, ee_b2p,
            nd_w1a, nd_w1b, nd_b1p, nd_w2p, nd_b2p)


def u_forward(t, node_f, xf, edge_index, packed_params):
    """Pallas version of U.forward(t, node_f).  `t` is unused, as in PyTorch."""
    del t
    n_nodes = node_f.shape[0]
    n_edges = edge_index.shape[1]
    out_pad = packed_params[-1].shape[1]   # nd_b2p: [1, OUT_PAD]

    # Sublane-align N and E.  Padded edges get id -1 so their one-hot rows are
    # all-zero (no gather contribution, no scatter contribution); padded node
    # rows are sliced away at the end.
    n_p = _round_up(n_nodes, 8)
    e_p = _round_up(n_edges, 8)
    xf_p = jnp.pad(xf.astype(jnp.float32), ((0, n_p - n_nodes), (0, 0)))
    nf_p = jnp.pad(node_f.astype(jnp.float32), ((0, n_p - n_nodes), (0, 0)))
    ei = edge_index.astype(jnp.int32)
    src = jnp.pad(ei[0], (0, e_p - n_edges), constant_values=-1)
    dst = jnp.pad(ei[1], (0, e_p - n_edges), constant_values=-1)
    src_col = src.reshape(e_p, 1)
    dst_col = dst.reshape(e_p, 1)
    dst_row = dst.reshape(1, e_p)

    n_inputs = 5 + len(packed_params)
    out = pl.pallas_call(
        _u_kernel,
        out_shape=jax.ShapeDtypeStruct((n_p, out_pad), jnp.float32),
        in_specs=[pl.BlockSpec(memory_space=pltpu.MemorySpace.VMEM)] * n_inputs,
        out_specs=pl.BlockSpec(memory_space=pltpu.MemorySpace.VMEM),
        # TODO(synk): at large N/E add a node-tile ("parallel") x edge-tile
        # ("arbitrary") grid with BlockSpecs (weights' index_map -> (0,0)),
        # PrefetchScalarGridSpec for dst-sorted edge segment offsets, and
        # CompilerParams(vmem_limit_bytes=...) sized for v7x's 64 MiB VMEM.
    )(src_col, dst_col, dst_row, xf_p, nf_p, *packed_params)
    return out[:n_nodes, :2]


def _reference(node_f, xf, edge_index, params):
    """Pure-JAX reference for correctness checking (PyTorch semantics)."""
    (ne_w1, ne_b1, ne_w2, ne_b2,
     ee_w1, ee_b1, ee_w2, ee_b2,
     nd_w1, nd_b1, nd_w2, nd_b2) = params
    mlp = lambda x, w1, b1, w2, b2: jnp.tanh(x @ w1 + b1) @ w2 + b2
    node_feature = jnp.concatenate([xf, node_f], axis=1)
    node_emb = mlp(node_feature, ne_w1, ne_b1, ne_w2, ne_b2)
    edge_feature = jnp.concatenate(
        [node_emb[edge_index[0]], node_emb[edge_index[1]]], axis=1)
    edge_emb = mlp(edge_feature, ee_w1, ee_b1, ee_w2, ee_b2)
    node_agg = jnp.zeros_like(node_emb).at[edge_index[1]].add(edge_emb)
    node_cat = jnp.concatenate([node_emb, node_agg], axis=1)
    return mlp(node_cat, nd_w1, nd_b1, nd_w2, nd_b2)


if __name__ == "__main__":
    key = jax.random.PRNGKey(0)
    model_size, model_dim, hid_dim = 8, 4, 32     # N nodes, per-node state dim

    # Ring graph, both directions -> E = 2N directed edges.
    idx = jnp.arange(model_size)
    src = jnp.concatenate([idx, (idx + 1) % model_size])
    dst = jnp.concatenate([(idx + 1) % model_size, idx])
    edge_index = jnp.stack([src, dst]).astype(jnp.int32)   # [2, E]

    k_xf, k_nf, k_p = jax.random.split(key, 3)
    xf = jax.random.normal(k_xf, (model_size, 2), jnp.float32)              # expected states
    node_f = jax.random.normal(k_nf, (model_size, model_dim), jnp.float32)  # node_f input
    params = init_params(k_p, model_dim, hid_dim)
    packed = pack_params(params)   # one-time host-side weight repack

    out = u_forward(0.0, node_f, xf, edge_index, packed)
    jax.block_until_ready(out)
    assert out.shape == (model_size, 2) and out.dtype == jnp.float32

    ref = _reference(node_f, xf, edge_index, params)
    assert jnp.allclose(out, ref, atol=1e-5, rtol=1e-4), (
        float(jnp.max(jnp.abs(out - ref))))

    print("KERNEL_OK")
</pallas_src>

<mosaic_0001>
module attributes {stable_mosaic.version = 11 : i64} {
  func.func @_u_kernel(%arg0: memref<16x1xi32, #tpu.memory_space<vmem>>, %arg1: memref<16x1xi32, #tpu.memory_space<vmem>>, %arg2: memref<1x16xi32, #tpu.memory_space<vmem>>, %arg3: memref<8x2xf32, #tpu.memory_space<vmem>>, %arg4: memref<8x4xf32, #tpu.memory_space<vmem>>, %arg5: memref<2x128xf32, #tpu.memory_space<vmem>>, %arg6: memref<4x128xf32, #tpu.memory_space<vmem>>, %arg7: memref<1x128xf32, #tpu.memory_space<vmem>>, %arg8: memref<128x128xf32, #tpu.memory_space<vmem>>, %arg9: memref<1x128xf32, #tpu.memory_space<vmem>>, %arg10: memref<128x128xf32, #tpu.memory_space<vmem>>, %arg11: memref<128x128xf32, #tpu.memory_space<vmem>>, %arg12: memref<1x128xf32, #tpu.memory_space<vmem>>, %arg13: memref<128x128xf32, #tpu.memory_space<vmem>>, %arg14: memref<1x128xf32, #tpu.memory_space<vmem>>, %arg15: memref<128x128xf32, #tpu.memory_space<vmem>>, %arg16: memref<128x128xf32, #tpu.memory_space<vmem>>, %arg17: memref<1x128xf32, #tpu.memory_space<vmem>>, %arg18: memref<128x128xf32, #tpu.memory_space<vmem>>, %arg19: memref<1x128xf32, #tpu.memory_space<vmem>>, %arg20: memref<8x128xf32, #tpu.memory_space<vmem>>) attributes {dimension_semantics = [], scalar_prefetch = 0 : i64, scratch_operands = 0 : i64, tpu.core_type = #tpu.core_type<tc>} {
    %c0 = arith.constant 0 : index
    %c0_0 = arith.constant 0 : index
    %0 = vector.load %arg3[%c0, %c0_0] : memref<8x2xf32, #tpu.memory_space<vmem>>, vector<8x2xf32>
    %c0_1 = arith.constant 0 : index
    %c0_2 = arith.constant 0 : index
    %1 = vector.load %arg4[%c0_1, %c0_2] : memref<8x4xf32, #tpu.memory_space<vmem>>, vector<8x4xf32>
    %c0_3 = arith.constant 0 : index
    %c0_4 = arith.constant 0 : index
    %2 = vector.load %arg5[%c0_3, %c0_4] : memref<2x128xf32, #tpu.memory_space<vmem>>, vector<2x128xf32>
    %c0_5 = arith.constant 0 : index
    %c0_6 = arith.constant 0 : index
    %3 = vector.load %arg6[%c0_5, %c0_6] : memref<4x128xf32, #tpu.memory_space<vmem>>, vector<4x128xf32>
    %c0_7 = arith.constant 0 : index
    %c0_8 = arith.constant 0 : index
    %4 = vector.load %arg7[%c0_7, %c0_8] : memref<1x128xf32, #tpu.memory_space<vmem>>, vector<1x128xf32>
    %c0_9 = arith.constant 0 : index
    %c0_10 = arith.constant 0 : index
    %5 = vector.load %arg8[%c0_9, %c0_10] : memref<128x128xf32, #tpu.memory_space<vmem>>, vector<128x128xf32>
    %c0_11 = arith.constant 0 : index
    %c0_12 = arith.constant 0 : index
    %6 = vector.load %arg9[%c0_11, %c0_12] : memref<1x128xf32, #tpu.memory_space<vmem>>, vector<1x128xf32>
    %cst = arith.constant dense<0.000000e+00> : vector<8x128xf32>
    %7 = tpu.matmul %0, %2, %cst {dimension_numbers = #tpu.dot_dimension_numbers<[1], [0], [0], [1], [0, 0, 1, 1], [], []>} : vector<8x2xf32>, vector<2x128xf32>, vector<8x128xf32> -> vector<8x128xf32>
    %cst_13 = arith.constant dense<0.000000e+00> : vector<8x128xf32>
    %8 = tpu.matmul %1, %3, %cst_13 {dimension_numbers = #tpu.dot_dimension_numbers<[1], [0], [0], [1], [0, 0, 1, 1], [], []>} : vector<8x4xf32>, vector<4x128xf32>, vector<8x128xf32> -> vector<8x128xf32>
    %9 = arith.addf %7, %8 : vector<8x128xf32>
    %10 = vector.broadcast %4 : vector<1x128xf32> to vector<8x128xf32>
    %11 = arith.addf %9, %10 : vector<8x128xf32>
    %12 = math.tanh %11 : vector<8x128xf32>
    %cst_14 = arith.constant dense<0.000000e+00> : vector<8x128xf32>
    %13 = tpu.matmul %12, %5, %cst_14 {dimension_numbers = #tpu.dot_dimension_numbers<[1], [0], [0], [1], [0, 0, 1, 1], [], []>} : vector<8x128xf32>, vector<128x128xf32>, vector<8x128xf32> -> vector<8x128xf32>
    %14 = vector.broadcast %6 : vector<1x128xf32> to vector<8x128xf32>
    %15 = arith.addf %13, %14 : vector<8x128xf32>
    %16 = tpu.iota {dimensions = array<i32: 1>} : vector<16x8xi32>
    %c0_15 = arith.constant 0 : index
    %c0_16 = arith.constant 0 : index
    %17 = vector.load %arg0[%c0_15, %c0_16] : memref<16x1xi32, #tpu.memory_space<vmem>>, vector<16x1xi32>
    %18 = vector.broadcast %17 : vector<16x1xi32> to vector<16x8xi32>
    %19 = arith.cmpi eq, %16, %18 : vector<16x8xi32>
    %20 = arith.extui %19 : vector<16x8xi1> to vector<16x8xi32>
    %21 = arith.sitofp %20 : vector<16x8xi32> to vector<16x8xf32>
    %c0_17 = arith.constant 0 : index
    %c0_18 = arith.constant 0 : index
    %22 = vector.load %arg1[%c0_17, %c0_18] : memref<16x1xi32, #tpu.memory_space<vmem>>, vector<16x1xi32>
    %23 = vector.broadcast %22 : vector<16x1xi32> to vector<16x8xi32>
    %24 = arith.cmpi eq, %16, %23 : vector<16x8xi32>
    %25 = arith.extui %24 : vector<16x8xi1> to vector<16x8xi32>
    %26 = arith.sitofp %25 : vector<16x8xi32> to vector<16x8xf32>
    %cst_19 = arith.constant dense<0.000000e+00> : vector<16x128xf32>
    %27 = tpu.matmul %21, %15, %cst_19 {dimension_numbers = #tpu.dot_dimension_numbers<[1], [0], [0], [1], [0, 0, 1, 1], [], []>} : vector<16x8xf32>, vector<8x128xf32>, vector<16x128xf32> -> vector<16x128xf32>
    %cst_20 = arith.constant dense<0.000000e+00> : vector<16x128xf32>
    %28 = tpu.matmul %26, %15, %cst_20 {dimension_numbers = #tpu.dot_dimension_numbers<[1], [0], [0], [1], [0, 0, 1, 1], [], []>} : vector<16x8xf32>, vector<8x128xf32>, vector<16x128xf32> -> vector<16x128xf32>
    %c0_21 = arith.constant 0 : index
    %c0_22 = arith.constant 0 : index
    %29 = vector.load %arg10[%c0_21, %c0_22] : memref<128x128xf32, #tpu.memory_space<vmem>>, vector<128x128xf32>
    %c0_23 = arith.constant 0 : index
    %c0_24 = arith.constant 0 : index
    %30 = vector.load %arg11[%c0_23, %c0_24] : memref<128x128xf32, #tpu.memory_space<vmem>>, vector<128x128xf32>
    %c0_25 = arith.constant 0 : index
    %c0_26 = arith.constant 0 : index
    %31 = vector.load %arg12[%c0_25, %c0_26] : memref<1x128xf32, #tpu.memory_space<vmem>>, vector<1x128xf32>
    %c0_27 = arith.constant 0 : index
    %c0_28 = arith.constant 0 : index
    %32 = vector.load %arg13[%c0_27, %c0_28] : memref<128x128xf32, #tpu.memory_space<vmem>>, vector<128x128xf32>
    %c0_29 = arith.constant 0 : index
    %c0_30 = arith.constant 0 : index
    %33 = vector.load %arg14[%c0_29, %c0_30] : memref<1x128xf32, #tpu.memory_space<vmem>>, vector<1x128xf32>
    %cst_31 = arith.constant dense<0.000000e+00> : vector<16x128xf32>
    %34 = tpu.matmul %27, %29, %cst_31 {dimension_numbers = #tpu.dot_dimension_numbers<[1], [0], [0], [1], [0, 0, 1, 1], [], []>} : vector<16x128xf32>, vector<128x128xf32>, vector<16x128xf32> -> vector<16x128xf32>
    %cst_32 = arith.constant dense<0.000000e+00> : vector<16x128xf32>
    %35 = tpu.matmul %28, %30, %cst_32 {dimension_numbers = #tpu.dot_dimension_numbers<[1], [0], [0], [1], [0, 0, 1, 1], [], []>} : vector<16x128xf32>, vector<128x128xf32>, vector<16x128xf32> -> vector<16x128xf32>
    %36 = arith.addf %34, %35 : vector<16x128xf32>
    %37 = vector.broadcast %31 : vector<1x128xf32> to vector<16x128xf32>
    %38 = arith.addf %36, %37 : vector<16x128xf32>
    %39 = math.tanh %38 : vector<16x128xf32>
    %cst_33 = arith.constant dense<0.000000e+00> : vector<16x128xf32>
    %40 = tpu.matmul %39, %32, %cst_33 {dimension_numbers = #tpu.dot_dimension_numbers<[1], [0], [0], [1], [0, 0, 1, 1], [], []>} : vector<16x128xf32>, vector<128x128xf32>, vector<16x128xf32> -> vector<16x128xf32>
    %41 = vector.broadcast %33 : vector<1x128xf32> to vector<16x128xf32>
    %42 = arith.addf %40, %41 : vector<16x128xf32>
    %43 = tpu.iota {dimensions = array<i32: 0>} : vector<8x16xi32>
    %c0_34 = arith.constant 0 : index
    %c0_35 = arith.constant 0 : index
    %44 = vector.load %arg2[%c0_34, %c0_35] : memref<1x16xi32, #tpu.memory_space<vmem>>, vector<1x16xi32>
    %45 = vector.broadcast %44 : vector<1x16xi32> to vector<8x16xi32>
    %46 = arith.cmpi eq, %43, %45 : vector<8x16xi32>
    %47 = arith.extui %46 : vector<8x16xi1> to vector<8x16xi32>
    %48 = arith.sitofp %47 : vector<8x16xi32> to vector<8x16xf32>
    %cst_36 = arith.constant dense<0.000000e+00> : vector<8x128xf32>
    %49 = tpu.matmul %48, %42, %cst_36 {dimension_numbers = #tpu.dot_dimension_numbers<[1], [0], [0], [1], [0, 0, 1, 1], [], []>} : vector<8x16xf32>, vector<16x128xf32>, vector<8x128xf32> -> vector<8x128xf32>
    %c0_37 = arith.constant 0 : index
    %c0_38 = arith.constant 0 : index
    %50 = vector.load %arg15[%c0_37, %c0_38] : memref<128x128xf32, #tpu.memory_space<vmem>>, vector<128x128xf32>
    %c0_39 = arith.constant 0 : index
    %c0_40 = arith.constant 0 : index
    %51 = vector.load %arg16[%c0_39, %c0_40] : memref<128x128xf32, #tpu.memory_space<vmem>>, vector<128x128xf32>
    %c0_41 = arith.constant 0 : index
    %c0_42 = arith.constant 0 : index
    %52 = vector.load %arg17[%c0_41, %c0_42] : memref<1x128xf32, #tpu.memory_space<vmem>>, vector<1x128xf32>
    %c0_43 = arith.constant 0 : index
    %c0_44 = arith.constant 0 : index
    %53 = vector.load %arg18[%c0_43, %c0_44] : memref<128x128xf32, #tpu.memory_space<vmem>>, vector<128x128xf32>
    %c0_45 = arith.constant 0 : index
    %c0_46 = arith.constant 0 : index
    %54 = vector.load %arg19[%c0_45, %c0_46] : memref<1x128xf32, #tpu.memory_space<vmem>>, vector<1x128xf32>
    %cst_47 = arith.constant dense<0.000000e+00> : vector<8x128xf32>
    %55 = tpu.matmul %15, %50, %cst_47 {dimension_numbers = #tpu.dot_dimension_numbers<[1], [0], [0], [1], [0, 0, 1, 1], [], []>} : vector<8x128xf32>, vector<128x128xf32>, vector<8x128xf32> -> vector<8x128xf32>
    %cst_48 = arith.constant dense<0.000000e+00> : vector<8x128xf32>
    %56 = tpu.matmul %49, %51, %cst_48 {dimension_numbers = #tpu.dot_dimension_numbers<[1], [0], [0], [1], [0, 0, 1, 1], [], []>} : vector<8x128xf32>, vector<128x128xf32>, vector<8x128xf32> -> vector<8x128xf32>
    %57 = arith.addf %55, %56 : vector<8x128xf32>
    %58 = vector.broadcast %52 : vector<1x128xf32> to vector<8x128xf32>
    %59 = arith.addf %57, %58 : vector<8x128xf32>
    %60 = math.tanh %59 : vector<8x128xf32>
    %cst_49 = arith.constant dense<0.000000e+00> : vector<8x128xf32>
    %61 = tpu.matmul %60, %53, %cst_49 {dimension_numbers = #tpu.dot_dimension_numbers<[1], [0], [0], [1], [0, 0, 1, 1], [], []>} : vector<8x128xf32>, vector<128x128xf32>, vector<8x128xf32> -> vector<8x128xf32>
    %62 = vector.broadcast %54 : vector<1x128xf32> to vector<8x128xf32>
    %63 = arith.addf %61, %62 : vector<8x128xf32>
    %c0_50 = arith.constant 0 : index
    %c0_51 = arith.constant 0 : index
    %64 = vector.load %arg20[%c0_50, %c0_51] : memref<8x128xf32, #tpu.memory_space<vmem>>, vector<8x128xf32>
    tpu.vector_store %arg20[%c0_50, %c0_51], %63 {strides = array<i32>} : memref<8x128xf32, #tpu.memory_space<vmem>>, vector<8x128xf32>,
    return
  }
}

</mosaic_0001>

<llo_original>
// kernel: tpu_custom_call.1
$region0: #{tpu_custom_call.1}
  #allocation0 [shape = 'u32[]', space=smem, size = 0x4, offset = 0x4, fixed_abs, tag = 'smem constant byte address 0x4 - core index']
  #allocation1 [shape = 'u32[144,128]{1,0:T(1,128)}', space=vmem, size = 0x12000, scoped, tag = 'internal scratch']
  %s0 = inlined_call_operand.vmem [shape: s32[16,1], index: 0, kind: input, shape index: {}]
  %s1 = inlined_call_operand.vmem [shape: s32[16,1], index: 1, kind: input, shape index: {}]
  %s2 = inlined_call_operand.vmem [shape: s32[1,16], index: 2, kind: input, shape index: {}]
  %s3 = inlined_call_operand.vmem [shape: f32[8,2], index: 3, kind: input, shape index: {}]
  %s4 = inlined_call_operand.vmem [shape: f32[8,4], index: 4, kind: input, shape index: {}]
  %s5 = inlined_call_operand.vmem [shape: f32[2,128], index: 5, kind: input, shape index: {}]
  %s6 = inlined_call_operand.vmem [shape: f32[4,128], index: 6, kind: input, shape index: {}]
  %s7 = inlined_call_operand.vmem [shape: f32[1,128], index: 7, kind: input, shape index: {}]
  %s8 = inlined_call_operand.hbm [shape: f32[128,128], index: 8, kind: input, shape index: {}]
  %s9 = inlined_call_operand.vmem [shape: f32[1,128], index: 9, kind: input, shape index: {}]
  %s10 = inlined_call_operand.hbm [shape: f32[128,128], index: 10, kind: input, shape index: {}]
  %s11 = inlined_call_operand.hbm [shape: f32[128,128], index: 11, kind: input, shape index: {}]
  %s12 = inlined_call_operand.vmem [shape: f32[1,128], index: 12, kind: input, shape index: {}]
  %s13 = inlined_call_operand.hbm [shape: f32[128,128], index: 13, kind: input, shape index: {}]
  %s14 = inlined_call_operand.vmem [shape: f32[1,128], index: 14, kind: input, shape index: {}]
  %s15 = inlined_call_operand.hbm [shape: f32[128,128], index: 15, kind: input, shape index: {}]
  %s16 = inlined_call_operand.hbm [shape: f32[128,128], index: 16, kind: input, shape index: {}]
  %s17 = inlined_call_operand.vmem [shape: f32[1,128], index: 17, kind: input, shape index: {}]
  %s18 = inlined_call_operand.hbm [shape: f32[128,128], index: 18, kind: input, shape index: {}]
  %s19 = inlined_call_operand.vmem [shape: f32[1,128], index: 19, kind: input, shape index: {}]
  %s20 = inlined_call_operand.hbm [shape: f32[8,128], index: 20, kind: output, shape index: {}]
  %s21 = sld [smem:[#allocation0]]
  $region118: #{tpu_custom_call.1} parent=0
    _
  %s23 = ssub.s32 1, %s21
  %s24 = scalar_select 0, %s23, %s21
  $region1: #{tpu_custom_call.1} parent=0
    #allocation2 [shape = 'u8[65536]{0}', space=vmem, size = 0x10000, scoped, tag = 'input window, operand 8, single buffered']
    #allocation3 [shape = 's32[1]{0}', space=sflag, size = 0x4, scoped, tag = 'scoped memory for tpu_custom_call.1']
    #allocation4 [shape = 's32[1]{0}', space=sflag, size = 0x4, scoped, tag = 'scoped memory for tpu_custom_call.1']
    #allocation5 [shape = 'u8[65536]{0}', space=vmem, size = 0x10000, scoped, tag = 'input window, operand 10, single buffered']
    #allocation6 [shape = 's32[1]{0}', space=sflag, size = 0x4, scoped, tag = 'scoped memory for tpu_custom_call.1']
    #allocation7 [shape = 'u8[65536]{0}', space=vmem, size = 0x10000, scoped, tag = 'input window, operand 11, single buffered']
    #allocation8 [shape = 'u8[65536]{0}', space=vmem, size = 0x10000, scoped, tag = 'input window, operand 13, single buffered']
    #allocation9 [shape = 's32[1]{0}', space=sflag, size = 0x4, scoped, tag = 'scoped memory for tpu_custom_call.1']
    #allocation10 [shape = 'u8[65536]{0}', space=vmem, size = 0x10000, scoped, tag = 'input window, operand 15, single buffered']
    #allocation11 [shape = 'u8[65536]{0}', space=vmem, size = 0x10000, scoped, tag = 'input window, operand 16, single buffered']
    #allocation12 [shape = 's32[1]{0}', space=sflag, size = 0x4, scoped, tag = 'scoped memory for tpu_custom_call.1']
    #allocation13 [shape = 'u8[65536]{0}', space=vmem, size = 0x10000, scoped, tag = 'input window, operand 18, single buffered']
    #allocation14 [shape = 'u8[4096]{0}', space=vmem, size = 0x1000, scoped, tag = 'output window, operand 0, single buffered']
    %25 = vsyncpa [#allocation3], 0
    %26 = vsyncpa [#allocation6], 0
    %27 = vsyncpa [#allocation9], 0
    %28 = vsyncpa [#allocation12], 0
    %29 = vsyncpa [#allocation4], 0
    // Predicated region
    $region2: #{tpu_custom_call.1} parent=1 // pred_check
      _
    $region3: #{tpu_custom_call.1} parent=1 // pred_check_branch
      %31 = sbr.rel (0) target = $region5
    $region4: #{tpu_custom_call.1} parent=1 // pred_region
      _
    $region5: #{tpu_custom_call.1} parent=1 // pred_fallthru
      _
    // Predicated region
    $region6: #{tpu_custom_call.1} parent=1 // pred_check
      _
    $region7: #{tpu_custom_call.1} parent=1 // pred_check_branch
      %33 = sbr.rel (0) target = $region9
    $region8: #{tpu_custom_call.1} parent=1 // pred_region
      _
    $region9: #{tpu_custom_call.1} parent=1 // pred_fallthru
      _
    // Predicated region
    $region10: #{tpu_custom_call.1} parent=1 // pred_check
      _
    $region11: #{tpu_custom_call.1} parent=1 // pred_check_branch
      %35 = sbr.rel (0) target = $region13
    $region12: #{tpu_custom_call.1} parent=1 // pred_region
      _
    $region13: #{tpu_custom_call.1} parent=1 // pred_fallthru
      _
    // Predicated region
    $region14: #{tpu_custom_call.1} parent=1 // pred_check
      _
    $region15: #{tpu_custom_call.1} parent=1 // pred_check_branch
      %37 = sbr.rel (0) target = $region17
    $region16: #{tpu_custom_call.1} parent=1 // pred_region
      _
    $region17: #{tpu_custom_call.1} parent=1 // pred_fallthru
      _
    // Predicated region
    $region18: #{tpu_custom_call.1} parent=1 // pred_check
      _
    $region19: #{tpu_custom_call.1} parent=1 // pred_check_branch
      %39 = sbr.rel (0) target = $region21
    $region20: #{tpu_custom_call.1} parent=1 // pred_region
      _
    $region21: #{tpu_custom_call.1} parent=1 // pred_fallthru
      _
    // Predicated region
    $region22: #{tpu_custom_call.1} parent=1 // pred_check
      _
    $region23: #{tpu_custom_call.1} parent=1 // pred_check_branch
      %41 = sbr.rel (0) target = $region25
    $region24: #{tpu_custom_call.1} parent=1 // pred_region
      _
    $region25: #{tpu_custom_call.1} parent=1 // pred_fallthru
      _
    // Predicated region
    $region26: #{tpu_custom_call.1} parent=1 // pred_check
      _
    $region27: #{tpu_custom_call.1} parent=1 // pred_check_branch
      %43 = sbr.rel (0) target = $region29
    $region28: #{tpu_custom_call.1} parent=1 // pred_region
      _
    $region29: #{tpu_custom_call.1} parent=1 // pred_fallthru
      _
    // Predicated region
    $region30: #{tpu_custom_call.1} parent=1 // pred_check
      _
    $region31: #{tpu_custom_call.1} parent=1 // pred_check_branch
      %45 = sbr.rel (0) target = $region33
    $region32: #{tpu_custom_call.1} parent=1 // pred_region
      _
    $region33: #{tpu_custom_call.1} parent=1 // pred_fallthru
      _
    // Predicated region
    $region34: #{tpu_custom_call.1} parent=1 // pred_check
      _
    $region35: #{tpu_custom_call.1} parent=1 // pred_check_branch
      %47 = sbr.rel (0) target = $region37
    $region36: #{tpu_custom_call.1} parent=1 // pred_region
      %s49 = ssub.s32 2048, 2048
      %50 = vsyncadd [#allocation3], %s49
      %s51 = sshll.u32 [#allocation2], 4
      %s52 = int_to_ptr.vmem [resolvable:$true] %s51
      %57 = dma.hbm_to_vmem [thread:$0]  %s8, 2048, %s52, [#allocation3], 128, 128, 8
    $region37: #{tpu_custom_call.1} parent=1 // pred_fallthru
      _
    // Predicated region
    $region38: #{tpu_custom_call.1} parent=1 // pred_check
      _
    $region39: #{tpu_custom_call.1} parent=1 // pred_check_branch
      %59 = sbr.rel (0) target = $region41
    $region40: #{tpu_custom_call.1} parent=1 // pred_region
      _
    $region41: #{tpu_custom_call.1} parent=1 // pred_fallthru
      _
    // Predicated region
    $region42: #{tpu_custom_call.1} parent=1 // pred_check
      _
    $region43: #{tpu_custom_call.1} parent=1 // pred_check_branch
      %61 = sbr.rel (0) target = $region45
    $region44: #{tpu_custom_call.1} parent=1 // pred_region
      %s63 = ssub.s32 2048, 2048
      %64 = vsyncadd [#allocation6], %s63
      %s65 = sshll.u32 [#allocation5], 4
      %s66 = int_to_ptr.vmem [resolvable:$true] %s65
      %71 = dma.hbm_to_vmem [thread:$0]  %s10, 2048, %s66, [#allocation6], 128, 128, 8
    $region45: #{tpu_custom_call.1} parent=1 // pred_fallthru
      _
    // Predicated region
    $region46: #{tpu_custom_call.1} parent=1 // pred_check
      _
    $region47: #{tpu_custom_call.1} parent=1 // pred_check_branch
      %73 = sbr.rel (0) target = $region49
    $region48: #{tpu_custom_call.1} parent=1 // pred_region
      %s75 = ssub.s32 2048, 2048
      %76 = vsyncadd [#allocation6], %s75
      %s77 = sshll.u32 [#allocation7], 4
      %s78 = int_to_ptr.vmem [resolvable:$true] %s77
      %83 = dma.hbm_to_vmem [thread:$0]  %s11, 2048, %s78, [#allocation6], 128, 128, 8
    $region49: #{tpu_custom_call.1} parent=1 // pred_fallthru
      _
    // Predicated region
    $region50: #{tpu_custom_call.1} parent=1 // pred_check
      _
    $region51: #{tpu_custom_call.1} parent=1 // pred_check_branch
      %85 = sbr.rel (0) target = $region53
    $region52: #{tpu_custom_call.1} parent=1 // pred_region
      _
    $region53: #{tpu_custom_call.1} parent=1 // pred_fallthru
      _
    // Predicated region
    $region54: #{tpu_custom_call.1} parent=1 // pred_check
      _
    $region55: #{tpu_custom_call.1} parent=1 // pred_check_branch
      %87 = sbr.rel (0) target = $region57
    $region56: #{tpu_custom_call.1} parent=1 // pred_region
      %s89 = ssub.s32 2048, 2048
      %90 = vsyncadd [#allocation9], %s89
      %s91 = sshll.u32 [#allocation8], 4
      %s92 = int_to_ptr.vmem [resolvable:$true] %s91
      %97 = dma.hbm_to_vmem [thread:$0]  %s13, 2048, %s92, [#allocation9], 128, 128, 8
    $region57: #{tpu_custom_call.1} parent=1 // pred_fallthru
      _
    // Predicated region
    $region58: #{tpu_custom_call.1} parent=1 // pred_check
      _
    $region59: #{tpu_custom_call.1} parent=1 // pred_check_branch
      %99 = sbr.rel (0) target = $region61
    $region60: #{tpu_custom_call.1} parent=1 // pred_region
      _
    $region61: #{tpu_custom_call.1} parent=1 // pred_fallthru
      _
    // Predicated region
    $region62: #{tpu_custom_call.1} parent=1 // pred_check
      _
    $region63: #{tpu_custom_call.1} parent=1 // pred_check_branch
      %101 = sbr.rel (0) target = $region65
    $region64: #{tpu_custom_call.1} parent=1 // pred_region
      %s103 = ssub.s32 2048, 2048
      %104 = vsyncadd [#allocation9], %s103
      %s105 = sshll.u32 [#allocation10], 4
      %s106 = int_to_ptr.vmem [resolvable:$true] %s105
      %111 = dma.hbm_to_vmem [thread:$0]  %s15, 2048, %s106, [#allocation9], 128, 128, 8
    $region65: #{tpu_custom_call.1} parent=1 // pred_fallthru
      _
    // Predicated region
    $region66: #{tpu_custom_call.1} parent=1 // pred_check
      _
    $region67: #{tpu_custom_call.1} parent=1 // pred_check_branch
      %113 = sbr.rel (0) target = $region69
    $region68: #{tpu_custom_call.1} parent=1 // pred_region
      %s115 = ssub.s32 2048, 2048
      %116 = vsyncadd [#allocation12], %s115
      %s117 = sshll.u32 [#allocation11], 4
      %s118 = int_to_ptr.vmem [resolvable:$true] %s117
      %123 = dma.hbm_to_vmem [thread:$0]  %s16, 2048, %s118, [#allocation12], 128, 128, 8
    $region69: #{tpu_custom_call.1} parent=1 // pred_fallthru
      _
    // Predicated region
    $region70: #{tpu_custom_call.1} parent=1 // pred_check
      _
    $region71: #{tpu_custom_call.1} parent=1 // pred_check_branch
      %125 = sbr.rel (0) target = $region73
    $region72: #{tpu_custom_call.1} parent=1 // pred_region
      _
    $region73: #{tpu_custom_call.1} parent=1 // pred_fallthru
      _
    // Predicated region
    $region74: #{tpu_custom_call.1} parent=1 // pred_check
      _
    $region75: #{tpu_custom_call.1} parent=1 // pred_check_branch
      %127 = sbr.rel (0) target = $region77
    $region76: #{tpu_custom_call.1} parent=1 // pred_region
      %s129 = ssub.s32 2048, 2048
      %130 = vsyncadd [#allocation12], %s129
      %s131 = sshll.u32 [#allocation13], 4
      %s132 = int_to_ptr.vmem [resolvable:$true] %s131
      %137 = dma.hbm_to_vmem [thread:$0]  %s18, 2048, %s132, [#allocation12], 128, 128, 8
    $region77: #{tpu_custom_call.1} parent=1 // pred_fallthru
      _
    // Predicated region
    $region78: #{tpu_custom_call.1} parent=1 // pred_check
      _
    $region79: #{tpu_custom_call.1} parent=1 // pred_check_branch
      %139 = sbr.rel (0) target = $region81
    $region80: #{tpu_custom_call.1} parent=1 // pred_region
      _
    $region81: #{tpu_custom_call.1} parent=1 // pred_fallthru
      _
    // Predicated region
    $region82: #{tpu_custom_call.1} parent=1 // pred_check
      _
    $region83: #{tpu_custom_call.1} parent=1 // pred_check_branch
      %141 = sbr.rel (0) target = $region85
    $region84: #{tpu_custom_call.1} parent=1 // pred_region
      %142 = dma.done [#allocation3], 2048
    $region85: #{tpu_custom_call.1} parent=1 // pred_fallthru
      _
    // Predicated region
    $region86: #{tpu_custom_call.1} parent=1 // pred_check
      _
    $region87: #{tpu_custom_call.1} parent=1 // pred_check_branch
      %144 = sbr.rel (0) target = $region89
    $region88: #{tpu_custom_call.1} parent=1 // pred_region
      %145 = dma.done [#allocation6], 2048
    $region89: #{tpu_custom_call.1} parent=1 // pred_fallthru
      _
    // Predicated region
    $region90: #{tpu_custom_call.1} parent=1 // pred_check
      _
    $region91: #{tpu_custom_call.1} parent=1 // pred_check_branch
      %147 = sbr.rel (0) target = $region93
    $region92: #{tpu_custom_call.1} parent=1 // pred_region
      %148 = dma.done [#allocation6], 2048
    $region93: #{tpu_custom_call.1} parent=1 // pred_fallthru
      _
    // Predicated region
    $region94: #{tpu_custom_call.1} parent=1 // pred_check
      _
    $region95: #{tpu_custom_call.1} parent=1 // pred_check_branch
      %150 = sbr.rel (0) target = $region97
    $region96: #{tpu_custom_call.1} parent=1 // pred_region
      %151 = dma.done [#allocation9], 2048
    $region97: #{tpu_custom_call.1} parent=1 // pred_fallthru
      _
    // Predicated region
    $region98: #{tpu_custom_call.1} parent=1 // pred_check
      _
    $region99: #{tpu_custom_call.1} parent=1 // pred_check_branch
      %153 = sbr.rel (0) target = $region101
    $region100: #{tpu_custom_call.1} parent=1 // pred_region
      %154 = dma.done [#allocation9], 2048
    $region101: #{tpu_custom_call.1} parent=1 // pred_fallthru
      _
    // Predicated region
    $region102: #{tpu_custom_call.1} parent=1 // pred_check
      _
    $region103: #{tpu_custom_call.1} parent=1 // pred_check_branch
      %156 = sbr.rel (0) target = $region105
    $region104: #{tpu_custom_call.1} parent=1 // pred_region
      %157 = dma.done [#allocation12], 2048
    $region105: #{tpu_custom_call.1} parent=1 // pred_fallthru
      _
    // Predicated region
    $region106: #{tpu_custom_call.1} parent=1 // pred_check
      _
    $region107: #{tpu_custom_call.1} parent=1 // pred_check_branch
      %159 = sbr.rel (0) target = $region109
    $region108: #{tpu_custom_call.1} parent=1 // pred_region
      %160 = dma.done [#allocation12], 2048
    $region109: #{tpu_custom_call.1} parent=1 // pred_fallthru
      _
    %v161 = vld [vmem:[%s3] sm:$0xff]
    %v162 = vld [vmem:[%s4] sm:$0xff]
    %v163 = vld [vmem:[%s5] sm:$0x3]
    %v164 = vld [vmem:[%s6] sm:$0xf]
    %v165 = vld [vmem:[%s7] sm:$0x1]
    %v166 = vld [vmem:[#allocation2] sm:$0xff]
    %v167 = vld [vmem:[#allocation2 + $0x8] sm:$0xff]
    %v168 = vld [vmem:[#allocation2 + $0x10] sm:$0xff]
    %v169 = vld [vmem:[#allocation2 + $0x18] sm:$0xff]
    %v170 = vld [vmem:[#allocation2 + $0x20] sm:$0xff]
    %v171 = vld [vmem:[#allocation2 + $0x28] sm:$0xff]
    %v172 = vld [vmem:[#allocation2 + $0x30] sm:$0xff]
    %v173 = vld [vmem:[#allocation2 + $0x38] sm:$0xff]
    %v174 = vld [vmem:[#allocation2 + $0x40] sm:$0xff]
    %v175 = vld [vmem:[#allocation2 + $0x48] sm:$0xff]
    %v176 = vld [vmem:[#allocation2 + $0x50] sm:$0xff]
    %v177 = vld [vmem:[#allocation2 + $0x58] sm:$0xff]
    %v178 = vld [vmem:[#allocation2 + $0x60] sm:$0xff]
    %v179 = vld [vmem:[#allocation2 + $0x68] sm:$0xff]
    %v180 = vld [vmem:[#allocation2 + $0x70] sm:$0xff]
    %v181 = vld [vmem:[#allocation2 + $0x78] sm:$0xff]
    %v182 = vld [vmem:[%s9] sm:$0x1]
    %vm183 = vcmask 31744
    %v185 = vsel %vm183, %v162, 0
    %vm187 = vcmask 1043456
    %v189 = vsel %vm187, %v164, 0
    %191 = vmatprep.subr.mxu0 0.0
    %192 = vmatpush1.msra.mxu0 0.0
    %193 = vmatprep.subr.mxu0 0.0
    %194 = vmatpush1.msra.mxu0 0.0
    %195 = vmatprep.subr.mxu0 0.0
    %196 = vmatpush1.msra.mxu0 0.0
    %197 = vmatprep.subr.mxu0 0.0
    %198 = vmatpush1.msra.mxu0 0.0
    %199 = vmatprep.subr.mxu0 0.0
    %200 = vmatpush1.msra.mxu0 0.0
    %201 = vmatprep.subr.mxu0 0.0
    %202 = vmatpush1.msra.mxu0 0.0
    %203 = vmatprep.subr.mxu0 0.0
    %204 = vmatpush1.msra.mxu0 0.0
    %205 = vmatprep.subr.mxu0 0.0
    %206 = vmatpush1.msra.mxu0 0.0
    %207 = vmatprep.subr.mxu0 0.0
    %208 = vmatpush1.msra.mxu0 0.0
    %209 = vmatprep.subr.mxu0 0.0
    %210 = vmatpush1.msra.mxu0 0.0
    %211 = vmatprep.subr.mxu0 0.0
    %212 = vmatpush1.msra.mxu0 0.0
    %213 = vmatprep.subr.mxu0 0.0
    %214 = vmatpush1.msra.mxu0 0.0
    %215 = vmatprep.subr.mxu0 0.0
    %216 = vmatpush1.msra.mxu0 0.0
    %217 = vmatprep.subr.mxu0 0.0
    %218 = vmatpush1.msra.mxu0 0.0
    %219 = vmatprep.subr.mxu0 0.0
    %220 = vmatpush1.msra.mxu0 0.0
    %221 = vmatprep.subr.mxu0 0.0
    %222 = vmatpush1.msra.mxu0 %v189
    %223 = vmatprep.subr.mxu0 0.0
    %224 = vmatpush2.msra.mxu0 0.0
    %225 = vmatprep.subr.mxu0 0.0
    %226 = vmatpush2.msra.mxu0 0.0
    %227 = vmatprep.subr.mxu0 0.0
    %228 = vmatpush2.msra.mxu0 0.0
    %229 = vmatprep.subr.mxu0 0.0
    %230 = vmatpush2.msra.mxu0 0.0
    %231 = vmatprep.subr.mxu0 0.0
    %232 = vmatpush2.msra.mxu0 0.0
    %233 = vmatprep.subr.mxu0 0.0
    %234 = vmatpush2.msra.mxu0 0.0
    %235 = vmatprep.subr.mxu0 0.0
    %236 = vmatpush2.msra.mxu0 0.0
    %237 = vmatprep.subr.mxu0 0.0
    %238 = vmatpush2.msra.mxu0 0.0
    %239 = vmatprep.subr.mxu0 0.0
    %240 = vmatpush2.msra.mxu0 0.0
    %241 = vmatprep.subr.mxu0 0.0
    %242 = vmatpush2.msra.mxu0 0.0
    %243 = vmatprep.subr.mxu0 0.0
    %244 = vmatpush2.msra.mxu0 0.0
    %245 = vmatprep.subr.mxu0 0.0
    %246 = vmatpush2.msra.mxu0 0.0
    %247 = vmatprep.subr.mxu0 0.0
    %248 = vmatpush2.msra.mxu0 0.0
    %249 = vmatprep.subr.mxu0 0.0
    %250 = vmatpush2.msra.mxu0 0.0
    %251 = vmatprep.subr.mxu0 0.0
    %252 = vmatpush2.msra.mxu0 0.0
    %253 = vmatprep.subr.mxu0 0.0
    %254 = vmatpush2.msra.mxu0 0.0
    %255 = vmatprep.mubr.f32.mxu0 0.0
    %256 = vmatmul.mubr.f32.gmra.mxu0 %v185
    %v257 = vpop.f32.mrf.mxu0
    %v258 = vadd.f32 0.0, %v257
    %v259 = vpop.f32.mrf.mxu0
    %260 = vdwg.mxu0
    %vm261 = vcmask 15360
    %v263 = vsel %vm261, %v161, 0
    %vm265 = vcmask 1041408
    %v267 = vsel %vm265, %v163, 0
    %269 = vmatprep.subr.mxu0 0.0
    %270 = vmatpush1.msra.mxu0 0.0
    %271 = vmatprep.subr.mxu0 0.0
    %272 = vmatpush1.msra.mxu0 0.0
    %273 = vmatprep.subr.mxu0 0.0
    %274 = vmatpush1.msra.mxu0 0.0
    %275 = vmatprep.subr.mxu0 0.0
    %276 = vmatpush1.msra.mxu0 0.0
    %277 = vmatprep.subr.mxu0 0.0
    %278 = vmatpush1.msra.mxu0 0.0
    %279 = vmatprep.subr.mxu0 0.0
    %280 = vmatpush1.msra.mxu0 0.0
    %281 = vmatprep.subr.mxu0 0.0
    %282 = vmatpush1.msra.mxu0 0.0
    %283 = vmatprep.subr.mxu0 0.0
    %284 = vmatpush1.msra.mxu0 0.0
    %285 = vmatprep.subr.mxu0 0.0
    %286 = vmatpush1.msra.mxu0 0.0
    %287 = vmatprep.subr.mxu0 0.0
    %288 = vmatpush1.msra.mxu0 0.0
    %289 = vmatprep.subr.mxu0 0.0
    %290 = vmatpush1.msra.mxu0 0.0
    %291 = vmatprep.subr.mxu0 0.0
    %292 = vmatpush1.msra.mxu0 0.0
    %293 = vmatprep.subr.mxu0 0.0
    %294 = vmatpush1.msra.mxu0 0.0
    %295 = vmatprep.subr.mxu0 0.0
    %296 = vmatpush1.msra.mxu0 0.0
    %297 = vmatprep.subr.mxu0 0.0
    %298 = vmatpush1.msra.mxu0 0.0
    %299 = vmatprep.subr.mxu0 0.0
    %300 = vmatpush1.msra.mxu0 %v267
    %301 = vmatprep.subr.mxu0 0.0
    %302 = vmatpush2.msra.mxu0 0.0
    %303 = vmatprep.subr.mxu0 0.0
    %304 = vmatpush2.msra.mxu0 0.0
    %305 = vmatprep.subr.mxu0 0.0
    %306 = vmatpush2.msra.mxu0 0.0
    %307 = vmatprep.subr.mxu0 0.0
    %308 = vmatpush2.msra.mxu0 0.0
    %309 = vmatprep.subr.mxu0 0.0
    %310 = vmatpush2.msra.mxu0 0.0
    %311 = vmatprep.subr.mxu0 0.0
    %312 = vmatpush2.msra.mxu0 0.0
    %313 = vmatprep.subr.mxu0 0.0
    %314 = vmatpush2.msra.mxu0 0.0
    %315 = vmatprep.subr.mxu0 0.0
    %316 = vmatpush2.msra.mxu0 0.0
    %317 = vmatprep.subr.mxu0 0.0
    %318 = vmatpush2.msra.mxu0 0.0
    %319 = vmatprep.subr.mxu0 0.0
    %320 = vmatpush2.msra.mxu0 0.0
    %321 = vmatprep.subr.mxu0 0.0
    %322 = vmatpush2.msra.mxu0 0.0
    %323 = vmatprep.subr.mxu0 0.0
    %324 = vmatpush2.msra.mxu0 0.0
    %325 = vmatprep.subr.mxu0 0.0
    %326 = vmatpush2.msra.mxu0 0.0
    %327 = vmatprep.subr.mxu0 0.0
    %328 = vmatpush2.msra.mxu0 0.0
    %329 = vmatprep.subr.mxu0 0.0
    %330 = vmatpush2.msra.mxu0 0.0
    %331 = vmatprep.subr.mxu0 0.0
    %332 = vmatpush2.msra.mxu0 0.0
    %333 = vmatprep.mubr.f32.mxu0 0.0
    %334 = vmatmul.mubr.f32.gmra.mxu0 %v263
    %v335 = vpop.f32.mrf.mxu0
    %v336 = vadd.f32 %v258, %v335
    %v337 = vpop.f32.mrf.mxu0
    %338 = vdwg.mxu0
    %v340 = vlaneseq
    %v341 = vshrl.u32 %v340, 7
    %v342 = vsub.s32 0, %v341
    %v343 = vrot.slane %v165, %v342
    %v345 = vadd.f32 %v336, %v343
    %v346 = vtanh.pop %v345
    %v348 = vlaneseq
    %v349 = vshrl.u32 %v348, 7
    %v350 = vsub.s32 0, %v349
    %v351 = vrot.slane %v182, %v350
    %353 = vmatprep.subr.mxu0 0.0
    %354 = vmatpush1.msra.mxu0 %v181
    %355 = vmatprep.subr.mxu0 0.0
    %356 = vmatpush1.msra.mxu0 %v180
    %357 = vmatprep.subr.mxu0 0.0
    %358 = vmatpush1.msra.mxu0 %v179
    %359 = vmatprep.subr.mxu0 0.0
    %360 = vmatpush1.msra.mxu0 %v178
    %361 = vmatprep.subr.mxu0 0.0
    %362 = vmatpush1.msra.mxu0 %v177
    %363 = vmatprep.subr.mxu0 0.0
    %364 = vmatpush1.msra.mxu0 %v176
    %365 = vmatprep.subr.mxu0 0.0
    %366 = vmatpush1.msra.mxu0 %v175
    %367 = vmatprep.subr.mxu0 0.0
    %368 = vmatpush1.msra.mxu0 %v174
    %369 = vmatprep.subr.mxu0 0.0
    %370 = vmatpush1.msra.mxu0 %v173
    %371 = vmatprep.subr.mxu0 0.0
    %372 = vmatpush1.msra.mxu0 %v172
    %373 = vmatprep.subr.mxu0 0.0
    %374 = vmatpush1.msra.mxu0 %v171
    %375 = vmatprep.subr.mxu0 0.0
    %376 = vmatpush1.msra.mxu0 %v170
    %377 = vmatprep.subr.mxu0 0.0
    %378 = vmatpush1.msra.mxu0 %v169
    %379 = vmatprep.subr.mxu0 0.0
    %380 = vmatpush1.msra.mxu0 %v168
    %381 = vmatprep.subr.mxu0 0.0
    %382 = vmatpush1.msra.mxu0 %v167
    %383 = vmatprep.subr.mxu0 0.0
    %384 = vmatpush1.msra.mxu0 %v166
    %385 = vmatprep.subr.mxu0 0.0
    %386 = vmatpush2.msra.mxu0 0.0
    %387 = vmatprep.subr.mxu0 0.0
    %388 = vmatpush2.msra.mxu0 0.0
    %389 = vmatprep.subr.mxu0 0.0
    %390 = vmatpush2.msra.mxu0 0.0
    %391 = vmatprep.subr.mxu0 0.0
    %392 = vmatpush2.msra.mxu0 0.0
    %393 = vmatprep.subr.mxu0 0.0
    %394 = vmatpush2.msra.mxu0 0.0
    %395 = vmatprep.subr.mxu0 0.0
    %396 = vmatpush2.msra.mxu0 0.0
    %397 = vmatprep.subr.mxu0 0.0
    %398 = vmatpush2.msra.mxu0 0.0
    %399 = vmatprep.subr.mxu0 0.0
    %400 = vmatpush2.msra.mxu0 0.0
    %401 = vmatprep.subr.mxu0 0.0
    %402 = vmatpush2.msra.mxu0 0.0
    %403 = vmatprep.subr.mxu0 0.0
    %404 = vmatpush2.msra.mxu0 0.0
    %405 = vmatprep.subr.mxu0 0.0
    %406 = vmatpush2.msra.mxu0 0.0
    %407 = vmatprep.subr.mxu0 0.0
    %408 = vmatpush2.msra.mxu0 0.0
    %409 = vmatprep.subr.mxu0 0.0
    %410 = vmatpush2.msra.mxu0 0.0
    %411 = vmatprep.subr.mxu0 0.0
    %412 = vmatpush2.msra.mxu0 0.0
    %413 = vmatprep.subr.mxu0 0.0
    %414 = vmatpush2.msra.mxu0 0.0
    %415 = vmatprep.subr.mxu0 0.0
    %416 = vmatpush2.msra.mxu0 0.0
    %417 = vmatprep.mubr.f32.mxu0 0.0
    %418 = vmatmul.mubr.f32.gmra.mxu0 %v346
    %v419 = vpop.f32.mrf.mxu0
    %v420 = vadd.f32 %v351, %v419
    %v421 = vpop.f32.mrf.mxu0
    %422 = vdwg.mxu0
    %v423 = vlaneseq
    %v424 = vand.u32 %v423, 127
    %v425 = vld [vmem:[%s0] sm:$0xff]
    %v426 = vld [vmem:[%s0 + $0x8] sm:$0xff]
    %427 = vset.pattern.permute.xlu0 0
    %428 = vperm.xlu0 %427, %v425
    %v429 = vpop.permute.xlu0 %428
    %430 = vset.pattern.permute.xlu0 0
    %431 = vperm.xlu0 %430, %v426
    %v432 = vpop.permute.xlu0 %431
    %vm433 = vcmp.eq.s32.totalorder %v424, %v429
    %vm434 = vcmp.eq.s32.totalorder %v424, %v432
    %v435 = vsel %vm433, 1, 0
    %v436 = vsel %vm434, 1, 0
    %v437 = vcvt.s32.f32 %v435
    %v438 = vcvt.s32.f32 %v436
    %v439 = vld [vmem:[%s1] sm:$0xff]
    %v440 = vld [vmem:[%s1 + $0x8] sm:$0xff]
    %441 = vset.pattern.permute.xlu0 0
    %442 = vperm.xlu0 %441, %v439
    %v443 = vpop.permute.xlu0 %442
    %444 = vset.pattern.permute.xlu0 0
    %445 = vperm.xlu0 %444, %v440
    %v446 = vpop.permute.xlu0 %445
    %vm447 = vcmp.eq.s32.totalorder %v424, %v443
    %vm448 = vcmp.eq.s32.totalorder %v424, %v446
    %v449 = vsel %vm447, 1, 0
    %v450 = vsel %vm448, 1, 0
    %v451 = vcvt.s32.f32 %v449
    %v452 = vcvt.s32.f32 %v450
    %vm453 = vcmask 64512
    %v455 = vsel %vm453, %v437, 0
    %v458 = vsel %vm453, %v438, 0
    %460 = vmatprep.subr.mxu0 0.0
    %461 = vmatpush1.msra.mxu0 0.0
    %462 = vmatprep.subr.mxu0 0.0
    %463 = vmatpush1.msra.mxu0 0.0
    %464 = vmatprep.subr.mxu0 0.0
    %465 = vmatpush1.msra.mxu0 0.0
    %466 = vmatprep.subr.mxu0 0.0
    %467 = vmatpush1.msra.mxu0 0.0
    %468 = vmatprep.subr.mxu0 0.0
    %469 = vmatpush1.msra.mxu0 0.0
    %470 = vmatprep.subr.mxu0 0.0
    %471 = vmatpush1.msra.mxu0 0.0
    %472 = vmatprep.subr.mxu0 0.0
    %473 = vmatpush1.msra.mxu0 0.0
    %474 = vmatprep.subr.mxu0 0.0
    %475 = vmatpush1.msra.mxu0 0.0
    %476 = vmatprep.subr.mxu0 0.0
    %477 = vmatpush1.msra.mxu0 0.0
    %478 = vmatprep.subr.mxu0 0.0
    %479 = vmatpush1.msra.mxu0 0.0
    %480 = vmatprep.subr.mxu0 0.0
    %481 = vmatpush1.msra.mxu0 0.0
    %482 = vmatprep.subr.mxu0 0.0
    %483 = vmatpush1.msra.mxu0 0.0
    %484 = vmatprep.subr.mxu0 0.0
    %485 = vmatpush1.msra.mxu0 0.0
    %486 = vmatprep.subr.mxu0 0.0
    %487 = vmatpush1.msra.mxu0 0.0
    %488 = vmatprep.subr.mxu0 0.0
    %489 = vmatpush1.msra.mxu0 0.0
    %490 = vmatprep.subr.mxu0 0.0
    %491 = vmatpush1.msra.mxu0 %v420
    %492 = vmatprep.subr.mxu0 0.0
    %493 = vmatpush2.msra.mxu0 0.0
    %494 = vmatprep.subr.mxu0 0.0
    %495 = vmatpush2.msra.mxu0 0.0
    %496 = vmatprep.subr.mxu0 0.0
    %497 = vmatpush2.msra.mxu0 0.0
    %498 = vmatprep.subr.mxu0 0.0
    %499 = vmatpush2.msra.mxu0 0.0
    %500 = vmatprep.subr.mxu0 0.0
    %501 = vmatpush2.msra.mxu0 0.0
    %502 = vmatprep.subr.mxu0 0.0
    %503 = vmatpush2.msra.mxu0 0.0
    %504 = vmatprep.subr.mxu0 0.0
    %505 = vmatpush2.msra.mxu0 0.0
    %506 = vmatprep.subr.mxu0 0.0
    %507 = vmatpush2.msra.mxu0 0.0
    %508 = vmatprep.subr.mxu0 0.0
    %509 = vmatpush2.msra.mxu0 0.0
    %510 = vmatprep.subr.mxu0 0.0
    %511 = vmatpush2.msra.mxu0 0.0
    %512 = vmatprep.subr.mxu0 0.0
    %513 = vmatpush2.msra.mxu0 0.0
    %514 = vmatprep.subr.mxu0 0.0
    %515 = vmatpush2.msra.mxu0 0.0
    %516 = vmatprep.subr.mxu0 0.0
    %517 = vmatpush2.msra.mxu0 0.0
    %518 = vmatprep.subr.mxu0 0.0
    %519 = vmatpush2.msra.mxu0 0.0
    %520 = vmatprep.subr.mxu0 0.0
    %521 = vmatpush2.msra.mxu0 0.0
    %522 = vmatprep.subr.mxu0 0.0
    %523 = vmatpush2.msra.mxu0 0.0
    %524 = vmatprep.mubr.f32.mxu0 0.0
    %525 = vmatmul.mubr.f32.gmra.mxu0 %v455
    %v526 = vpop.f32.mrf.mxu0
    %v527 = vadd.f32 0.0, %v526
    %v528 = vpop.f32.mrf.mxu0
    %529 = vmatprep.mubr.f32.mxu0 0.0
    %530 = vmatmul.mubr.f32.gmra.mxu0 %v458
    %v531 = vpop.f32.mrf.mxu0
    %v532 = vadd.f32 0.0, %v531
    %v533 = vpop.f32.mrf.mxu0
    %534 = vdwg.mxu0
    %v536 = vsel %vm453, %v451, 0
    %v539 = vsel %vm453, %v452, 0
    %541 = vmatprep.subr.mxu0 0.0
    %542 = vmatpush1.msra.mxu0 0.0
    %543 = vmatprep.subr.mxu0 0.0
    %544 = vmatpush1.msra.mxu0 0.0
    %545 = vmatprep.subr.mxu0 0.0
    %546 = vmatpush1.msra.mxu0 0.0
    %547 = vmatprep.subr.mxu0 0.0
    %548 = vmatpush1.msra.mxu0 0.0
    %549 = vmatprep.subr.mxu0 0.0
    %550 = vmatpush1.msra.mxu0 0.0
    %551 = vmatprep.subr.mxu0 0.0
    %552 = vmatpush1.msra.mxu0 0.0
    %553 = vmatprep.subr.mxu0 0.0
    %554 = vmatpush1.msra.mxu0 0.0
    %555 = vmatprep.subr.mxu0 0.0
    %556 = vmatpush1.msra.mxu0 0.0
    %557 = vmatprep.subr.mxu0 0.0
    %558 = vmatpush1.msra.mxu0 0.0
    %559 = vmatprep.subr.mxu0 0.0
    %560 = vmatpush1.msra.mxu0 0.0
    %561 = vmatprep.subr.mxu0 0.0
    %562 = vmatpush1.msra.mxu0 0.0
    %563 = vmatprep.subr.mxu0 0.0
    %564 = vmatpush1.msra.mxu0 0.0
    %565 = vmatprep.subr.mxu0 0.0
    %566 = vmatpush1.msra.mxu0 0.0
    %567 = vmatprep.subr.mxu0 0.0
    %568 = vmatpush1.msra.mxu0 0.0
    %569 = vmatprep.subr.mxu0 0.0
    %570 = vmatpush1.msra.mxu0 0.0
    %571 = vmatprep.subr.mxu0 0.0
    %572 = vmatpush1.msra.mxu0 %v420
    %573 = vmatprep.subr.mxu0 0.0
    %574 = vmatpush2.msra.mxu0 0.0
    %575 = vmatprep.subr.mxu0 0.0
    %576 = vmatpush2.msra.mxu0 0.0
    %577 = vmatprep.subr.mxu0 0.0
    %578 = vmatpush2.msra.mxu0 0.0
    %579 = vmatprep.subr.mxu0 0.0
    %580 = vmatpush2.msra.mxu0 0.0
    %581 = vmatprep.subr.mxu0 0.0
    %582 = vmatpush2.msra.mxu0 0.0
    %583 = vmatprep.subr.mxu0 0.0
    %584 = vmatpush2.msra.mxu0 0.0
    %585 = vmatprep.subr.mxu0 0.0
    %586 = vmatpush2.msra.mxu0 0.0
    %587 = vmatprep.subr.mxu0 0.0
    %588 = vmatpush2.msra.mxu0 0.0
    %589 = vmatprep.subr.mxu0 0.0
    %590 = vmatpush2.msra.mxu0 0.0
    %591 = vmatprep.subr.mxu0 0.0
    %592 = vmatpush2.msra.mxu0 0.0
    %593 = vmatprep.subr.mxu0 0.0
    %594 = vmatpush2.msra.mxu0 0.0
    %595 = vmatprep.subr.mxu0 0.0
    %596 = vmatpush2.msra.mxu0 0.0
    %597 = vmatprep.subr.mxu0 0.0
    %598 = vmatpush2.msra.mxu0 0.0
    %599 = vmatprep.subr.mxu0 0.0
    %600 = vmatpush2.msra.mxu0 0.0
    %601 = vmatprep.subr.mxu0 0.0
    %602 = vmatpush2.msra.mxu0 0.0
    %603 = vmatprep.subr.mxu0 0.0
    %604 = vmatpush2.msra.mxu0 0.0
    %605 = vmatprep.mubr.f32.mxu0 0.0
    %606 = vmatmul.mubr.f32.gmra.mxu0 %v536
    %v607 = vpop.f32.mrf.mxu0
    %v608 = vadd.f32 0.0, %v607
    %v609 = vpop.f32.mrf.mxu0
    %610 = vmatprep.mubr.f32.mxu0 0.0
    %611 = vmatmul.mubr.f32.gmra.mxu0 %v539
    %v612 = vpop.f32.mrf.mxu0
    %v613 = vadd.f32 0.0, %v612
    %v614 = vpop.f32.mrf.mxu0
    %615 = vdwg.mxu0
    %v616 = vld [vmem:[#allocation5] sm:$0xff]
    %v617 = vld [vmem:[#allocation5 + $0x8] sm:$0xff]
    %v618 = vld [vmem:[#allocation5 + $0x10] sm:$0xff]
    %v619 = vld [vmem:[#allocation5 + $0x18] sm:$0xff]
    %v620 = vld [vmem:[#allocation5 + $0x20] sm:$0xff]
    %v621 = vld [vmem:[#allocation5 + $0x28] sm:$0xff]
    %v622 = vld [vmem:[#allocation5 + $0x30] sm:$0xff]
    %v623 = vld [vmem:[#allocation5 + $0x38] sm:$0xff]
    %v624 = vld [vmem:[#allocation5 + $0x40] sm:$0xff]
    %v625 = vld [vmem:[#allocation5 + $0x48] sm:$0xff]
    %v626 = vld [vmem:[#allocation5 + $0x50] sm:$0xff]
    %v627 = vld [vmem:[#allocation5 + $0x58] sm:$0xff]
    %v628 = vld [vmem:[#allocation5 + $0x60] sm:$0xff]
    %v629 = vld [vmem:[#allocation5 + $0x68] sm:$0xff]
    %v630 = vld [vmem:[#allocation5 + $0x70] sm:$0xff]
    %v631 = vld [vmem:[#allocation5 + $0x78] sm:$0xff]
    %v632 = vld [vmem:[#allocation7] sm:$0xff]
    %v633 = vld [vmem:[#allocation7 + $0x8] sm:$0xff]
    %v634 = vld [vmem:[#allocation7 + $0x10] sm:$0xff]
    %v635 = vld [vmem:[#allocation7 + $0x18] sm:$0xff]
    %v636 = vld [vmem:[#allocation7 + $0x20] sm:$0xff]
    %v637 = vld [vmem:[#allocation7 + $0x28] sm:$0xff]
    %v638 = vld [vmem:[#allocation7 + $0x30] sm:$0xff]
    %v639 = vld [vmem:[#allocation7 + $0x38] sm:$0xff]
    %v640 = vld [vmem:[#allocation7 + $0x40] sm:$0xff]
    %v641 = vld [vmem:[#allocation7 + $0x48] sm:$0xff]
    %v642 = vld [vmem:[#allocation7 + $0x50] sm:$0xff]
    %v643 = vld [vmem:[#allocation7 + $0x58] sm:$0xff]
    %v644 = vld [vmem:[#allocation7 + $0x60] sm:$0xff]
    %v645 = vld [vmem:[#allocation7 + $0x68] sm:$0xff]
    %v646 = vld [vmem:[#allocation7 + $0x70] sm:$0xff]
    %v647 = vld [vmem:[#allocation7 + $0x78] sm:$0xff]
    %v648 = vld [vmem:[%s12] sm:$0x1]
    %v649 = vld [vmem:[#allocation8] sm:$0xff]
    %v650 = vld [vmem:[#allocation8 + $0x8] sm:$0xff]
    %v651 = vld [vmem:[#allocation8 + $0x10] sm:$0xff]
    %v652 = vld [vmem:[#allocation8 + $0x18] sm:$0xff]
    %v653 = vld [vmem:[#allocation8 + $0x20] sm:$0xff]
    %v654 = vld [vmem:[#allocation8 + $0x28] sm:$0xff]
    %v655 = vld [vmem:[#allocation8 + $0x30] sm:$0xff]
    %v656 = vld [vmem:[#allocation8 + $0x38] sm:$0xff]
    %v657 = vld [vmem:[#allocation8 + $0x40] sm:$0xff]
    %v658 = vld [vmem:[#allocation8 + $0x48] sm:$0xff]
    %v659 = vld [vmem:[#allocation8 + $0x50] sm:$0xff]
    %v660 = vld [vmem:[#allocation8 + $0x58] sm:$0xff]
    %v661 = vld [vmem:[#allocation8 + $0x60] sm:$0xff]
    %v662 = vld [vmem:[#allocation8 + $0x68] sm:$0xff]
    %v663 = vld [vmem:[#allocation8 + $0x70] sm:$0xff]
    %v664 = vld [vmem:[#allocation8 + $0x78] sm:$0xff]
    %v665 = vld [vmem:[%s14] sm:$0x1]
    %666 = vmatprep.subr.mxu0 0.0
    %667 = vmatpush1.msra.mxu0 %v647
    %668 = vmatprep.subr.mxu0 0.0
    %669 = vmatpush1.msra.mxu0 %v646
    %670 = vmatprep.subr.mxu0 0.0
    %671 = vmatpush1.msra.mxu0 %v645
    %672 = vmatprep.subr.mxu0 0.0
    %673 = vmatpush1.msra.mxu0 %v644
    %674 = vmatprep.subr.mxu0 0.0
    %675 = vmatpush1.msra.mxu0 %v643
    %676 = vmatprep.subr.mxu0 0.0
    %677 = vmatpush1.msra.mxu0 %v642
    %678 = vmatprep.subr.mxu0 0.0
    %679 = vmatpush1.msra.mxu0 %v641
    %680 = vmatprep.subr.mxu0 0.0
    %681 = vmatpush1.msra.mxu0 %v640
    %682 = vmatprep.subr.mxu0 0.0
    %683 = vmatpush1.msra.mxu0 %v639
    %684 = vmatprep.subr.mxu0 0.0
    %685 = vmatpush1.msra.mxu0 %v638
    %686 = vmatprep.subr.mxu0 0.0
    %687 = vmatpush1.msra.mxu0 %v637
    %688 = vmatprep.subr.mxu0 0.0
    %689 = vmatpush1.msra.mxu0 %v636
    %690 = vmatprep.subr.mxu0 0.0
    %691 = vmatpush1.msra.mxu0 %v635
    %692 = vmatprep.subr.mxu0 0.0
    %693 = vmatpush1.msra.mxu0 %v634
    %694 = vmatprep.subr.mxu0 0.0
    %695 = vmatpush1.msra.mxu0 %v633
    %696 = vmatprep.subr.mxu0 0.0
    %697 = vmatpush1.msra.mxu0 %v632
    %698 = vmatprep.subr.mxu0 0.0
    %699 = vmatpush2.msra.mxu0 0.0
    %700 = vmatprep.subr.mxu0 0.0
    %701 = vmatpush2.msra.mxu0 0.0
    %702 = vmatprep.subr.mxu0 0.0
    %703 = vmatpush2.msra.mxu0 0.0
    %704 = vmatprep.subr.mxu0 0.0
    %705 = vmatpush2.msra.mxu0 0.0
    %706 = vmatprep.subr.mxu0 0.0
    %707 = vmatpush2.msra.mxu0 0.0
    %708 = vmatprep.subr.mxu0 0.0
    %709 = vmatpush2.msra.mxu0 0.0
    %710 = vmatprep.subr.mxu0 0.0
    %711 = vmatpush2.msra.mxu0 0.0
    %712 = vmatprep.subr.mxu0 0.0
    %713 = vmatpush2.msra.mxu0 0.0
    %714 = vmatprep.subr.mxu0 0.0
    %715 = vmatpush2.msra.mxu0 0.0
    %716 = vmatprep.subr.mxu0 0.0
    %717 = vmatpush2.msra.mxu0 0.0
    %718 = vmatprep.subr.mxu0 0.0
    %719 = vmatpush2.msra.mxu0 0.0
    %720 = vmatprep.subr.mxu0 0.0
    %721 = vmatpush2.msra.mxu0 0.0
    %722 = vmatprep.subr.mxu0 0.0
    %723 = vmatpush2.msra.mxu0 0.0
    %724 = vmatprep.subr.mxu0 0.0
    %725 = vmatpush2.msra.mxu0 0.0
    %726 = vmatprep.subr.mxu0 0.0
    %727 = vmatpush2.msra.mxu0 0.0
    %728 = vmatprep.subr.mxu0 0.0
    %729 = vmatpush2.msra.mxu0 0.0
    %730 = vmatprep.mubr.f32.mxu0 0.0
    %731 = vmatmul.mubr.f32.gmra.mxu0 %v608
    %v732 = vpop.f32.mrf.mxu0
    %v733 = vadd.f32 0.0, %v732
    %v734 = vpop.f32.mrf.mxu0
    %735 = vmatprep.mubr.f32.mxu0 0.0
    %736 = vmatmul.mubr.f32.gmra.mxu0 %v613
    %v737 = vpop.f32.mrf.mxu0
    %v738 = vadd.f32 0.0, %v737
    %v739 = vpop.f32.mrf.mxu0
    %740 = vdwg.mxu0
    %741 = vmatprep.subr.mxu0 0.0
    %742 = vmatpush1.msra.mxu0 %v631
    %743 = vmatprep.subr.mxu0 0.0
    %744 = vmatpush1.msra.mxu0 %v630
    %745 = vmatprep.subr.mxu0 0.0
    %746 = vmatpush1.msra.mxu0 %v629
    %747 = vmatprep.subr.mxu0 0.0
    %748 = vmatpush1.msra.mxu0 %v628
    %749 = vmatprep.subr.mxu0 0.0
    %750 = vmatpush1.msra.mxu0 %v627
    %751 = vmatprep.subr.mxu0 0.0
    %752 = vmatpush1.msra.mxu0 %v626
    %753 = vmatprep.subr.mxu0 0.0
    %754 = vmatpush1.msra.mxu0 %v625
    %755 = vmatprep.subr.mxu0 0.0
    %756 = vmatpush1.msra.mxu0 %v624
    %757 = vmatprep.subr.mxu0 0.0
    %758 = vmatpush1.msra.mxu0 %v623
    %759 = vmatprep.subr.mxu0 0.0
    %760 = vmatpush1.msra.mxu0 %v622
    %761 = vmatprep.subr.mxu0 0.0
    %762 = vmatpush1.msra.mxu0 %v621
    %763 = vmatprep.subr.mxu0 0.0
    %764 = vmatpush1.msra.mxu0 %v620
    %765 = vmatprep.subr.mxu0 0.0
    %766 = vmatpush1.msra.mxu0 %v619
    %767 = vmatprep.subr.mxu0 0.0
    %768 = vmatpush1.msra.mxu0 %v618
    %769 = vmatprep.subr.mxu0 0.0
    %770 = vmatpush1.msra.mxu0 %v617
    %771 = vmatprep.subr.mxu0 0.0
    %772 = vmatpush1.msra.mxu0 %v616
    %773 = vmatprep.subr.mxu0 0.0
    %774 = vmatpush2.msra.mxu0 0.0
    %775 = vmatprep.subr.mxu0 0.0
    %776 = vmatpush2.msra.mxu0 0.0
    %777 = vmatprep.subr.mxu0 0.0
    %778 = vmatpush2.msra.mxu0 0.0
    %779 = vmatprep.subr.mxu0 0.0
    %780 = vmatpush2.msra.mxu0 0.0
    %781 = vmatprep.subr.mxu0 0.0
    %782 = vmatpush2.msra.mxu0 0.0
    %783 = vmatprep.subr.mxu0 0.0
    %784 = vmatpush2.msra.mxu0 0.0
    %785 = vmatprep.subr.mxu0 0.0
    %786 = vmatpush2.msra.mxu0 0.0
    %787 = vmatprep.subr.mxu0 0.0
    %788 = vmatpush2.msra.mxu0 0.0
    %789 = vmatprep.subr.mxu0 0.0
    %790 = vmatpush2.msra.mxu0 0.0
    %791 = vmatprep.subr.mxu0 0.0
    %792 = vmatpush2.msra.mxu0 0.0
    %793 = vmatprep.subr.mxu0 0.0
    %794 = vmatpush2.msra.mxu0 0.0
    %795 = vmatprep.subr.mxu0 0.0
    %796 = vmatpush2.msra.mxu0 0.0
    %797 = vmatprep.subr.mxu0 0.0
    %798 = vmatpush2.msra.mxu0 0.0
    %799 = vmatprep.subr.mxu0 0.0
    %800 = vmatpush2.msra.mxu0 0.0
    %801 = vmatprep.subr.mxu0 0.0
    %802 = vmatpush2.msra.mxu0 0.0
    %803 = vmatprep.subr.mxu0 0.0
    %804 = vmatpush2.msra.mxu0 0.0
    %805 = vmatprep.mubr.f32.mxu0 0.0
    %806 = vmatmul.mubr.f32.gmra.mxu0 %v527
    %v807 = vpop.f32.mrf.mxu0
    %v808 = vadd.f32 %v733, %v807
    %v809 = vpop.f32.mrf.mxu0
    %810 = vmatprep.mubr.f32.mxu0 0.0
    %811 = vmatmul.mubr.f32.gmra.mxu0 %v532
    %v812 = vpop.f32.mrf.mxu0
    %v813 = vadd.f32 %v738, %v812
    %v814 = vpop.f32.mrf.mxu0
    %815 = vdwg.mxu0
    %v817 = vlaneseq
    %v818 = vshrl.u32 %v817, 7
    %v819 = vsub.s32 0, %v818
    %v820 = vrot.slane %v648, %v819
    %v822 = vadd.f32 %v808, %v820
    %v823 = vadd.f32 %v813, %v820
    %v824 = vtanh.pop %v822
    %v825 = vtanh.pop %v823
    %v827 = vlaneseq
    %v828 = vshrl.u32 %v827, 7
    %v829 = vsub.s32 0, %v828
    %v830 = vrot.slane %v665, %v829
    %832 = vmatprep.subr.mxu0 0.0
    %833 = vmatpush1.msra.mxu0 %v664
    %834 = vmatprep.subr.mxu0 0.0
    %835 = vmatpush1.msra.mxu0 %v663
    %836 = vmatprep.subr.mxu0 0.0
    %837 = vmatpush1.msra.mxu0 %v662
    %838 = vmatprep.subr.mxu0 0.0
    %839 = vmatpush1.msra.mxu0 %v661
    %840 = vmatprep.subr.mxu0 0.0
    %841 = vmatpush1.msra.mxu0 %v660
    %842 = vmatprep.subr.mxu0 0.0
    %843 = vmatpush1.msra.mxu0 %v659
    %844 = vmatprep.subr.mxu0 0.0
    %845 = vmatpush1.msra.mxu0 %v658
    %846 = vmatprep.subr.mxu0 0.0
    %847 = vmatpush1.msra.mxu0 %v657
    %848 = vmatprep.subr.mxu0 0.0
    %849 = vmatpush1.msra.mxu0 %v656
    %850 = vmatprep.subr.mxu0 0.0
    %851 = vmatpush1.msra.mxu0 %v655
    %852 = vmatprep.subr.mxu0 0.0
    %853 = vmatpush1.msra.mxu0 %v654
    %854 = vmatprep.subr.mxu0 0.0
    %855 = vmatpush1.msra.mxu0 %v653
    %856 = vmatprep.subr.mxu0 0.0
    %857 = vmatpush1.msra.mxu0 %v652
    %858 = vmatprep.subr.mxu0 0.0
    %859 = vmatpush1.msra.mxu0 %v651
    %860 = vmatprep.subr.mxu0 0.0
    %861 = vmatpush1.msra.mxu0 %v650
    %862 = vmatprep.subr.mxu0 0.0
    %863 = vmatpush1.msra.mxu0 %v649
    %864 = vmatprep.subr.mxu0 0.0
    %865 = vmatpush2.msra.mxu0 0.0
    %866 = vmatprep.subr.mxu0 0.0
    %867 = vmatpush2.msra.mxu0 0.0
    %868 = vmatprep.subr.mxu0 0.0
    %869 = vmatpush2.msra.mxu0 0.0
    %870 = vmatprep.subr.mxu0 0.0
    %871 = vmatpush2.msra.mxu0 0.0
    %872 = vmatprep.subr.mxu0 0.0
    %873 = vmatpush2.msra.mxu0 0.0
    %874 = vmatprep.subr.mxu0 0.0
    %875 = vmatpush2.msra.mxu0 0.0
    %876 = vmatprep.subr.mxu0 0.0
    %877 = vmatpush2.msra.mxu0 0.0
    %878 = vmatprep.subr.mxu0 0.0
    %879 = vmatpush2.msra.mxu0 0.0
    %880 = vmatprep.subr.mxu0 0.0
    %881 = vmatpush2.msra.mxu0 0.0
    %882 = vmatprep.subr.mxu0 0.0
    %883 = vmatpush2.msra.mxu0 0.0
    %884 = vmatprep.subr.mxu0 0.0
    %885 = vmatpush2.msra.mxu0 0.0
    %886 = vmatprep.subr.mxu0 0.0
    %887 = vmatpush2.msra.mxu0 0.0
    %888 = vmatprep.subr.mxu0 0.0
    %889 = vmatpush2.msra.mxu0 0.0
    %890 = vmatprep.subr.mxu0 0.0
    %891 = vmatpush2.msra.mxu0 0.0
    %892 = vmatprep.subr.mxu0 0.0
    %893 = vmatpush2.msra.mxu0 0.0
    %894 = vmatprep.subr.mxu0 0.0
    %895 = vmatpush2.msra.mxu0 0.0
    %896 = vmatprep.mubr.f32.mxu0 0.0
    %897 = vmatmul.mubr.f32.gmra.mxu0 %v824
    %v898 = vpop.f32.mrf.mxu0
    %v899 = vadd.f32 %v830, %v898
    %v900 = vpop.f32.mrf.mxu0
    %901 = vmatprep.mubr.f32.mxu0 0.0
    %902 = vmatmul.mubr.f32.gmra.mxu0 %v825
    %v903 = vpop.f32.mrf.mxu0
    %v904 = vadd.f32 %v830, %v903
    %v905 = vpop.f32.mrf.mxu0
    %906 = vdwg.mxu0
    %v907 = vlaneseq
    %v908 = vshrl.u32 %v907, 7
    %v909 = vld [vmem:[%s2] sm:$0x1]
    %v910 = vlaneseq
    %v911 = vshrl.u32 %v910, 7
    %v912 = vsub.s32 0, %v911
    %v913 = vrot.slane %v909, %v912
    %vm914 = vcmp.eq.s32.totalorder %v908, %v913
    %v915 = vsel %vm914, 1, 0
    %v916 = vcvt.s32.f32 %v915
    %vm917 = vcmask 130048
    %v919 = vsel %vm917, %v916, 0
    %921 = vmatprep.subr.mxu0 0.0
    %922 = vmatpush1.msra.mxu0 0.0
    %923 = vmatprep.subr.mxu0 0.0
    %924 = vmatpush1.msra.mxu0 0.0
    %925 = vmatprep.subr.mxu0 0.0
    %926 = vmatpush1.msra.mxu0 0.0
    %927 = vmatprep.subr.mxu0 0.0
    %928 = vmatpush1.msra.mxu0 0.0
    %929 = vmatprep.subr.mxu0 0.0
    %930 = vmatpush1.msra.mxu0 0.0
    %931 = vmatprep.subr.mxu0 0.0
    %932 = vmatpush1.msra.mxu0 0.0
    %933 = vmatprep.subr.mxu0 0.0
    %934 = vmatpush1.msra.mxu0 0.0
    %935 = vmatprep.subr.mxu0 0.0
    %936 = vmatpush1.msra.mxu0 0.0
    %937 = vmatprep.subr.mxu0 0.0
    %938 = vmatpush1.msra.mxu0 0.0
    %939 = vmatprep.subr.mxu0 0.0
    %940 = vmatpush1.msra.mxu0 0.0
    %941 = vmatprep.subr.mxu0 0.0
    %942 = vmatpush1.msra.mxu0 0.0
    %943 = vmatprep.subr.mxu0 0.0
    %944 = vmatpush1.msra.mxu0 0.0
    %945 = vmatprep.subr.mxu0 0.0
    %946 = vmatpush1.msra.mxu0 0.0
    %947 = vmatprep.subr.mxu0 0.0
    %948 = vmatpush1.msra.mxu0 0.0
    %949 = vmatprep.subr.mxu0 0.0
    %950 = vmatpush1.msra.mxu0 %v904
    %951 = vmatprep.subr.mxu0 0.0
    %952 = vmatpush1.msra.mxu0 %v899
    %953 = vmatprep.subr.mxu0 0.0
    %954 = vmatpush2.msra.mxu0 0.0
    %955 = vmatprep.subr.mxu0 0.0
    %956 = vmatpush2.msra.mxu0 0.0
    %957 = vmatprep.subr.mxu0 0.0
    %958 = vmatpush2.msra.mxu0 0.0
    %959 = vmatprep.subr.mxu0 0.0
    %960 = vmatpush2.msra.mxu0 0.0
    %961 = vmatprep.subr.mxu0 0.0
    %962 = vmatpush2.msra.mxu0 0.0
    %963 = vmatprep.subr.mxu0 0.0
    %964 = vmatpush2.msra.mxu0 0.0
    %965 = vmatprep.subr.mxu0 0.0
    %966 = vmatpush2.msra.mxu0 0.0
    %967 = vmatprep.subr.mxu0 0.0
    %968 = vmatpush2.msra.mxu0 0.0
    %969 = vmatprep.subr.mxu0 0.0
    %970 = vmatpush2.msra.mxu0 0.0
    %971 = vmatprep.subr.mxu0 0.0
    %972 = vmatpush2.msra.mxu0 0.0
    %973 = vmatprep.subr.mxu0 0.0
    %974 = vmatpush2.msra.mxu0 0.0
    %975 = vmatprep.subr.mxu0 0.0
    %976 = vmatpush2.msra.mxu0 0.0
    %977 = vmatprep.subr.mxu0 0.0
    %978 = vmatpush2.msra.mxu0 0.0
    %979 = vmatprep.subr.mxu0 0.0
    %980 = vmatpush2.msra.mxu0 0.0
    %981 = vmatprep.subr.mxu0 0.0
    %982 = vmatpush2.msra.mxu0 0.0
    %983 = vmatprep.subr.mxu0 0.0
    %984 = vmatpush2.msra.mxu0 0.0
    %985 = vmatprep.mubr.f32.mxu0 0.0
    %986 = vmatmul.mubr.f32.gmra.mxu0 %v919
    %v987 = vpop.f32.mrf.mxu0
    %v988 = vadd.f32 0.0, %v987
    %v989 = vpop.f32.mrf.mxu0
    %990 = vdwg.mxu0
    %v991 = vld [vmem:[#allocation10] sm:$0xff]
    %v992 = vld [vmem:[#allocation10 + $0x8] sm:$0xff]
    %v993 = vld [vmem:[#allocation10 + $0x10] sm:$0xff]
    %v994 = vld [vmem:[#allocation10 + $0x18] sm:$0xff]
    %v995 = vld [vmem:[#allocation10 + $0x20] sm:$0xff]
    %v996 = vld [vmem:[#allocation10 + $0x28] sm:$0xff]
    %v997 = vld [vmem:[#allocation10 + $0x30] sm:$0xff]
    %v998 = vld [vmem:[#allocation10 + $0x38] sm:$0xff]
    %v999 = vld [vmem:[#allocation10 + $0x40] sm:$0xff]
    %v1000 = vld [vmem:[#allocation10 + $0x48] sm:$0xff]
    %v1001 = vld [vmem:[#allocation10 + $0x50] sm:$0xff]
    %v1002 = vld [vmem:[#allocation10 + $0x58] sm:$0xff]
    %v1003 = vld [vmem:[#allocation10 + $0x60] sm:$0xff]
    %v1004 = vld [vmem:[#allocation10 + $0x68] sm:$0xff]
    %v1005 = vld [vmem:[#allocation10 + $0x70] sm:$0xff]
    %v1006 = vld [vmem:[#allocation10 + $0x78] sm:$0xff]
    %v1007 = vld [vmem:[#allocation11] sm:$0xff]
    %v1008 = vld [vmem:[#allocation11 + $0x8] sm:$0xff]
    %v1009 = vld [vmem:[#allocation11 + $0x10] sm:$0xff]
    %v1010 = vld [vmem:[#allocation11 + $0x18] sm:$0xff]
    %v1011 = vld [vmem:[#allocation11 + $0x20] sm:$0xff]
    %v1012 = vld [vmem:[#allocation11 + $0x28] sm:$0xff]
    %v1013 = vld [vmem:[#allocation11 + $0x30] sm:$0xff]
    %v1014 = vld [vmem:[#allocation11 + $0x38] sm:$0xff]
    %v1015 = vld [vmem:[#allocation11 + $0x40] sm:$0xff]
    %v1016 = vld [vmem:[#allocation11 + $0x48] sm:$0xff]
    %v1017 = vld [vmem:[#allocation11 + $0x50] sm:$0xff]
    %v1018 = vld [vmem:[#allocation11 + $0x58] sm:$0xff]
    %v1019 = vld [vmem:[#allocation11 + $0x60] sm:$0xff]
    %v1020 = vld [vmem:[#allocation11 + $0x68] sm:$0xff]
    %v1021 = vld [vmem:[#allocation11 + $0x70] sm:$0xff]
    %v1022 = vld [vmem:[#allocation11 + $0x78] sm:$0xff]
    %v1023 = vld [vmem:[%s17] sm:$0x1]
    %v1024 = vld [vmem:[#allocation13] sm:$0xff]
    %v1025 = vld [vmem:[#allocation13 + $0x8] sm:$0xff]
    %v1026 = vld [vmem:[#allocation13 + $0x10] sm:$0xff]
    %v1027 = vld [vmem:[#allocation13 + $0x18] sm:$0xff]
    %v1028 = vld [vmem:[#allocation13 + $0x20] sm:$0xff]
    %v1029 = vld [vmem:[#allocation13 + $0x28] sm:$0xff]
    %v1030 = vld [vmem:[#allocation13 + $0x30] sm:$0xff]
    %v1031 = vld [vmem:[#allocation13 + $0x38] sm:$0xff]
    %v1032 = vld [vmem:[#allocation13 + $0x40] sm:$0xff]
    %v1033 = vld [vmem:[#allocation13 + $0x48] sm:$0xff]
    %v1034 = vld [vmem:[#allocation13 + $0x50] sm:$0xff]
    %v1035 = vld [vmem:[#allocation13 + $0x58] sm:$0xff]
    %v1036 = vld [vmem:[#allocation13 + $0x60] sm:$0xff]
    %v1037 = vld [vmem:[#allocation13 + $0x68] sm:$0xff]
    %v1038 = vld [vmem:[#allocation13 + $0x70] sm:$0xff]
    %v1039 = vld [vmem:[#allocation13 + $0x78] sm:$0xff]
    %v1040 = vld [vmem:[%s19] sm:$0x1]
    %1041 = vmatprep.subr.mxu0 0.0
    %1042 = vmatpush1.msra.mxu0 %v1022
    %1043 = vmatprep.subr.mxu0 0.0
    %1044 = vmatpush1.msra.mxu0 %v1021
    %1045 = vmatprep.subr.mxu0 0.0
    %1046 = vmatpush1.msra.mxu0 %v1020
    %1047 = vmatprep.subr.mxu0 0.0
    %1048 = vmatpush1.msra.mxu0 %v1019
    %1049 = vmatprep.subr.mxu0 0.0
    %1050 = vmatpush1.msra.mxu0 %v1018
    %1051 = vmatprep.subr.mxu0 0.0
    %1052 = vmatpush1.msra.mxu0 %v1017
    %1053 = vmatprep.subr.mxu0 0.0
    %1054 = vmatpush1.msra.mxu0 %v1016
    %1055 = vmatprep.subr.mxu0 0.0
    %1056 = vmatpush1.msra.mxu0 %v1015
    %1057 = vmatprep.subr.mxu0 0.0
    %1058 = vmatpush1.msra.mxu0 %v1014
    %1059 = vmatprep.subr.mxu0 0.0
    %1060 = vmatpush1.msra.mxu0 %v1013
    %1061 = vmatprep.subr.mxu0 0.0
    %1062 = vmatpush1.msra.mxu0 %v1012
    %1063 = vmatprep.subr.mxu0 0.0
    %1064 = vmatpush1.msra.mxu0 %v1011
    %1065 = vmatprep.subr.mxu0 0.0
    %1066 = vmatpush1.msra.mxu0 %v1010
    %1067 = vmatprep.subr.mxu0 0.0
    %1068 = vmatpush1.msra.mxu0 %v1009
    %1069 = vmatprep.subr.mxu0 0.0
    %1070 = vmatpush1.msra.mxu0 %v1008
    %1071 = vmatprep.subr.mxu0 0.0
    %1072 = vmatpush1.msra.mxu0 %v1007
    %1073 = vmatprep.subr.mxu0 0.0
    %1074 = vmatpush2.msra.mxu0 0.0
    %1075 = vmatprep.subr.mxu0 0.0
    %1076 = vmatpush2.msra.mxu0 0.0
    %1077 = vmatprep.subr.mxu0 0.0
    %1078 = vmatpush2.msra.mxu0 0.0
    %1079 = vmatprep.subr.mxu0 0.0
    %1080 = vmatpush2.msra.mxu0 0.0
    %1081 = vmatprep.subr.mxu0 0.0
    %1082 = vmatpush2.msra.mxu0 0.0
    %1083 = vmatprep.subr.mxu0 0.0
    %1084 = vmatpush2.msra.mxu0 0.0
    %1085 = vmatprep.subr.mxu0 0.0
    %1086 = vmatpush2.msra.mxu0 0.0
    %1087 = vmatprep.subr.mxu0 0.0
    %1088 = vmatpush2.msra.mxu0 0.0
    %1089 = vmatprep.subr.mxu0 0.0
    %1090 = vmatpush2.msra.mxu0 0.0
    %1091 = vmatprep.subr.mxu0 0.0
    %1092 = vmatpush2.msra.mxu0 0.0
    %1093 = vmatprep.subr.mxu0 0.0
    %1094 = vmatpush2.msra.mxu0 0.0
    %1095 = vmatprep.subr.mxu0 0.0
    %1096 = vmatpush2.msra.mxu0 0.0
    %1097 = vmatprep.subr.mxu0 0.0
    %1098 = vmatpush2.msra.mxu0 0.0
    %1099 = vmatprep.subr.mxu0 0.0
    %1100 = vmatpush2.msra.mxu0 0.0
    %1101 = vmatprep.subr.mxu0 0.0
    %1102 = vmatpush2.msra.mxu0 0.0
    %1103 = vmatprep.subr.mxu0 0.0
    %1104 = vmatpush2.msra.mxu0 0.0
    %1105 = vmatprep.mubr.f32.mxu0 0.0
    %1106 = vmatmul.mubr.f32.gmra.mxu0 %v988
    %v1107 = vpop.f32.mrf.mxu0
    %v1108 = vadd.f32 0.0, %v1107
    %v1109 = vpop.f32.mrf.mxu0
    %1110 = vdwg.mxu0
    %1111 = vmatprep.subr.mxu0 0.0
    %1112 = vmatpush1.msra.mxu0 %v1006
    %1113 = vmatprep.subr.mxu0 0.0
    %1114 = vmatpush1.msra.mxu0 %v1005
    %1115 = vmatprep.subr.mxu0 0.0
    %1116 = vmatpush1.msra.mxu0 %v1004
    %1117 = vmatprep.subr.mxu0 0.0
    %1118 = vmatpush1.msra.mxu0 %v1003
    %1119 = vmatprep.subr.mxu0 0.0
    %1120 = vmatpush1.msra.mxu0 %v1002
    %1121 = vmatprep.subr.mxu0 0.0
    %1122 = vmatpush1.msra.mxu0 %v1001
    %1123 = vmatprep.subr.mxu0 0.0
    %1124 = vmatpush1.msra.mxu0 %v1000
    %1125 = vmatprep.subr.mxu0 0.0
    %1126 = vmatpush1.msra.mxu0 %v999
    %1127 = vmatprep.subr.mxu0 0.0
    %1128 = vmatpush1.msra.mxu0 %v998
    %1129 = vmatprep.subr.mxu0 0.0
    %1130 = vmatpush1.msra.mxu0 %v997
    %1131 = vmatprep.subr.mxu0 0.0
    %1132 = vmatpush1.msra.mxu0 %v996
    %1133 = vmatprep.subr.mxu0 0.0
    %1134 = vmatpush1.msra.mxu0 %v995
    %1135 = vmatprep.subr.mxu0 0.0
    %1136 = vmatpush1.msra.mxu0 %v994
    %1137 = vmatprep.subr.mxu0 0.0
    %1138 = vmatpush1.msra.mxu0 %v993
    %1139 = vmatprep.subr.mxu0 0.0
    %1140 = vmatpush1.msra.mxu0 %v992
    %1141 = vmatprep.subr.mxu0 0.0
    %1142 = vmatpush1.msra.mxu0 %v991
    %1143 = vmatprep.subr.mxu0 0.0
    %1144 = vmatpush2.msra.mxu0 0.0
    %1145 = vmatprep.subr.mxu0 0.0
    %1146 = vmatpush2.msra.mxu0 0.0
    %1147 = vmatprep.subr.mxu0 0.0
    %1148 = vmatpush2.msra.mxu0 0.0
    %1149 = vmatprep.subr.mxu0 0.0
    %1150 = vmatpush2.msra.mxu0 0.0
    %1151 = vmatprep.subr.mxu0 0.0
    %1152 = vmatpush2.msra.mxu0 0.0
    %1153 = vmatprep.subr.mxu0 0.0
    %1154 = vmatpush2.msra.mxu0 0.0
    %1155 = vmatprep.subr.mxu0 0.0
    %1156 = vmatpush2.msra.mxu0 0.0
    %1157 = vmatprep.subr.mxu0 0.0
    %1158 = vmatpush2.msra.mxu0 0.0
    %1159 = vmatprep.subr.mxu0 0.0
    %1160 = vmatpush2.msra.mxu0 0.0
    %1161 = vmatprep.subr.mxu0 0.0
    %1162 = vmatpush2.msra.mxu0 0.0
    %1163 = vmatprep.subr.mxu0 0.0
    %1164 = vmatpush2.msra.mxu0 0.0
    %1165 = vmatprep.subr.mxu0 0.0
    %1166 = vmatpush2.msra.mxu0 0.0
    %1167 = vmatprep.subr.mxu0 0.0
    %1168 = vmatpush2.msra.mxu0 0.0
    %1169 = vmatprep.subr.mxu0 0.0
    %1170 = vmatpush2.msra.mxu0 0.0
    %1171 = vmatprep.subr.mxu0 0.0
    %1172 = vmatpush2.msra.mxu0 0.0
    %1173 = vmatprep.subr.mxu0 0.0
    %1174 = vmatpush2.msra.mxu0 0.0
    %1175 = vmatprep.mubr.f32.mxu0 0.0
    %1176 = vmatmul.mubr.f32.gmra.mxu0 %v420
    %v1177 = vpop.f32.mrf.mxu0
    %v1178 = vadd.f32 %v1108, %v1177
    %v1179 = vpop.f32.mrf.mxu0
    %1180 = vdwg.mxu0
    %v1182 = vlaneseq
    %v1183 = vshrl.u32 %v1182, 7
    %v1184 = vsub.s32 0, %v1183
    %v1185 = vrot.slane %v1023, %v1184
    %v1187 = vadd.f32 %v1178, %v1185
    %v1188 = vtanh.pop %v1187
    %v1190 = vlaneseq
    %v1191 = vshrl.u32 %v1190, 7
    %v1192 = vsub.s32 0, %v1191
    %v1193 = vrot.slane %v1040, %v1192
    %1195 = vmatprep.subr.mxu0 0.0
    %1196 = vmatpush1.msra.mxu0 %v1039
    %1197 = vmatprep.subr.mxu0 0.0
    %1198 = vmatpush1.msra.mxu0 %v1038
    %1199 = vmatprep.subr.mxu0 0.0
    %1200 = vmatpush1.msra.mxu0 %v1037
    %1201 = vmatprep.subr.mxu0 0.0
    %1202 = vmatpush1.msra.mxu0 %v1036
    %1203 = vmatprep.subr.mxu0 0.0
    %1204 = vmatpush1.msra.mxu0 %v1035
    %1205 = vmatprep.subr.mxu0 0.0
    %1206 = vmatpush1.msra.mxu0 %v1034
    %1207 = vmatprep.subr.mxu0 0.0
    %1208 = vmatpush1.msra.mxu0 %v1033
    %1209 = vmatprep.subr.mxu0 0.0
    %1210 = vmatpush1.msra.mxu0 %v1032
    %1211 = vmatprep.subr.mxu0 0.0
    %1212 = vmatpush1.msra.mxu0 %v1031
    %1213 = vmatprep.subr.mxu0 0.0
    %1214 = vmatpush1.msra.mxu0 %v1030
    %1215 = vmatprep.subr.mxu0 0.0
    %1216 = vmatpush1.msra.mxu0 %v1029
    %1217 = vmatprep.subr.mxu0 0.0
    %1218 = vmatpush1.msra.mxu0 %v1028
    %1219 = vmatprep.subr.mxu0 0.0
    %1220 = vmatpush1.msra.mxu0 %v1027
    %1221 = vmatprep.subr.mxu0 0.0
    %1222 = vmatpush1.msra.mxu0 %v1026
    %1223 = vmatprep.subr.mxu0 0.0
    %1224 = vmatpush1.msra.mxu0 %v1025
    %1225 = vmatprep.subr.mxu0 0.0
    %1226 = vmatpush1.msra.mxu0 %v1024
    %1227 = vmatprep.subr.mxu0 0.0
    %1228 = vmatpush2.msra.mxu0 0.0
    %1229 = vmatprep.subr.mxu0 0.0
    %1230 = vmatpush2.msra.mxu0 0.0
    %1231 = vmatprep.subr.mxu0 0.0
    %1232 = vmatpush2.msra.mxu0 0.0
    %1233 = vmatprep.subr.mxu0 0.0
    %1234 = vmatpush2.msra.mxu0 0.0
    %1235 = vmatprep.subr.mxu0 0.0
    %1236 = vmatpush2.msra.mxu0 0.0
    %1237 = vmatprep.subr.mxu0 0.0
    %1238 = vmatpush2.msra.mxu0 0.0
    %1239 = vmatprep.subr.mxu0 0.0
    %1240 = vmatpush2.msra.mxu0 0.0
    %1241 = vmatprep.subr.mxu0 0.0
    %1242 = vmatpush2.msra.mxu0 0.0
    %1243 = vmatprep.subr.mxu0 0.0
    %1244 = vmatpush2.msra.mxu0 0.0
    %1245 = vmatprep.subr.mxu0 0.0
    %1246 = vmatpush2.msra.mxu0 0.0
    %1247 = vmatprep.subr.mxu0 0.0
    %1248 = vmatpush2.msra.mxu0 0.0
    %1249 = vmatprep.subr.mxu0 0.0
    %1250 = vmatpush2.msra.mxu0 0.0
    %1251 = vmatprep.subr.mxu0 0.0
    %1252 = vmatpush2.msra.mxu0 0.0
    %1253 = vmatprep.subr.mxu0 0.0
    %1254 = vmatpush2.msra.mxu0 0.0
    %1255 = vmatprep.subr.mxu0 0.0
    %1256 = vmatpush2.msra.mxu0 0.0
    %1257 = vmatprep.subr.mxu0 0.0
    %1258 = vmatpush2.msra.mxu0 0.0
    %1259 = vmatprep.mubr.f32.mxu0 0.0
    %1260 = vmatmul.mubr.f32.gmra.mxu0 %v1188
    %v1261 = vpop.f32.mrf.mxu0
    %v1262 = vadd.f32 %v1193, %v1261
    %v1263 = vpop.f32.mrf.mxu0
    %1264 = vdwg.mxu0
    %1265 = vst [vmem:[#allocation14] sm:$0xff] %v1262
    // Predicated region
    $region110: #{tpu_custom_call.1} parent=1 // pred_check
      _
    $region111: #{tpu_custom_call.1} parent=1 // pred_check_branch
      %1267 = sbr.rel (0) target = $region113
    $region112: #{tpu_custom_call.1} parent=1 // pred_region
      %s1269 = ssub.s32 128, 128
      %1270 = vsyncadd [#allocation4], %s1269
      %s1272 = sshll.u32 [#allocation14], 4
      %s1273 = int_to_ptr.vmem [resolvable:$true] %s1272
      %1275 = dma.vmem_to_hbm [thread:$0]  %s1273, 128, %s20, [#allocation4]
    $region113: #{tpu_custom_call.1} parent=1 // pred_fallthru
      _
    // Predicated region
    $region114: #{tpu_custom_call.1} parent=1 // pred_check
      _
    $region115: #{tpu_custom_call.1} parent=1 // pred_check_branch
      %1277 = sbr.rel (0) target = $region117
    $region116: #{tpu_custom_call.1} parent=1 // pred_region
      %1278 = dma.done [#allocation4], 128
    $region117: #{tpu_custom_call.1} parent=1 // pred_fallthru
      _
    %1279 = vsyncpa [#allocation3], 1
    %1280 = vsyncpa [#allocation6], 1
    %1281 = vsyncpa [#allocation9], 1
    %1282 = vsyncpa [#allocation12], 1
    %1283 = vsyncpa [#allocation4], 1

</llo_original>
